<compile_context>
chip_gen: v6e
topology: v6e:2x2x1
jax: 0.10.0
libtpu: 0.0.40
codegen_flags: <defaults>
</compile_context>

<pallas_src>
import functools
import numpy as np
import jax
import jax.numpy as jnp
from jax import lax
from jax.experimental import pallas as pl
from jax.experimental.pallas import tpu as pltpu


def _leaky_relu(x, alpha):
    return jnp.where(x > 0, x, alpha * x)


def _expm1_neg(x):
    # Mosaic-safe expm1 for x <= 0 (avoids exp(x)-1 cancellation near 0):
    #   expm1(x) = 2*tanh(x/2) / (1 - tanh(x/2));  for x<=0, tanh(x/2) in (-1, 0].
    t = jnp.tanh(0.5 * x)
    return 2.0 * t / (1.0 - t)


def _scatter_sum(edge_vals, onehot_t):
    """sum_e edge_vals[:, e] * onehot_t[n, e] -> (rows, n); contracts the lane (edge) axis."""
    return lax.dot_general(edge_vals, onehot_t, (((1,), (1,)), ((), ())),
                           preferred_element_type=jnp.float32)


# -------- phase 1: edge_m (fused x gather), edge_e, e_rowsum ('in' scatter of edge_e) --------
def _phase1_kernel(erel_ref, sd_ref, axs_ref, axd_ref, arel_ref, a2_ref,
                   em_ref, ee_ref, ers_ref, *, alpha, n_real):
    t = pl.program_id(0)
    n_pad = ers_ref.shape[1]
    te = sd_ref.shape[1]

    sd = sd_ref[...]                                       # (2, TE) int32
    src = sd[0:1, :]
    dst = sd[1:2, :]

    # one shared iota per body (no CSE of broadcast_in_dim in JAX)
    iota = lax.broadcasted_iota(jnp.int32, (n_pad, te), 0)
    s_t = (iota == src).astype(jnp.float32)                # (N_pad, TE)
    d_t = (iota == dst).astype(jnp.float32)                # (N_pad, TE)

    # edge_m = leakyrelu(a_src@x^T[:,src] + a_dst@x^T[:,dst] + a_rel@edge_embed^T)
    pre = (jnp.dot(axs_ref[...], s_t, preferred_element_type=jnp.float32)
           + jnp.dot(axd_ref[...], d_t, preferred_element_type=jnp.float32)
           + jnp.dot(arel_ref[...], erel_ref[...], preferred_element_type=jnp.float32))
    edge_m = _leaky_relu(pre, alpha)                       # (out, TE), edges lane-dense
    em_ref[...] = edge_m

    # powers = -leakyrelu(a_2 @ edge_m) as a VPU multiply + sublane reduce (no width-1 matvec)
    powers = -_leaky_relu(jnp.sum(edge_m * a2_ref[...], axis=0, keepdims=True), alpha)  # (1, TE)

    valid = dst < n_real                                   # padded edges carry sentinel index
    edge_e = jnp.where(valid, jnp.exp(powers), 0.0)        # (1, TE)
    ee_ref[...] = edge_e

    @pl.when(t == 0)
    def _():
        ers_ref[...] = jnp.zeros_like(ers_ref)

    ers_ref[...] += _scatter_sum(edge_e, d_t)              # 'in' scatter over dst -> (1, N_pad)

    @pl.when(t == pl.num_programs(0) - 1)
    def _():
        ers_ref[...] = jnp.where(ers_ref[...] == 0.0, 1e-12, ers_ref[...])


# -------- phase 2: relative attention + den_rowsum ('out' scatter of rel) --------
def _phase2_kernel(ee_ref, sd_ref, ers_ref, rel_ref, den_ref):
    t = pl.program_id(0)
    n_pad = ers_ref.shape[1]
    te = ee_ref.shape[1]

    src = sd_ref[...][0:1, :]
    s_t = (lax.broadcasted_iota(jnp.int32, (n_pad, te), 0) == src).astype(jnp.float32)

    in_edge = jnp.dot(ers_ref[...], s_t, preferred_element_type=jnp.float32)  # (1, TE) gather@src
    in_edge = jnp.where(in_edge == 0.0, 1.0, in_edge)      # only padded edges can hit exact zero
    rel = ee_ref[...] / in_edge
    rel_ref[...] = rel

    @pl.when(t == 0)
    def _():
        den_ref[...] = jnp.zeros_like(den_ref)

    den_ref[...] += _scatter_sum(rel, s_t)                 # 'out' scatter over src -> (1, N_pad)

    @pl.when(t == pl.num_programs(0) - 1)
    def _():
        den_ref[...] = jnp.where(den_ref[...] == 0.0, 1e-12, den_ref[...])


# -------- phase 3: entity-rank update + masked softmax over real nodes --------
def _phase3_kernel(rel_ref, sd_ref, nodevals_ref, er_ref, sm_ref, *, d_damp, n_real):
    t = pl.program_id(0)
    n_pad = nodevals_ref.shape[1]
    te = rel_ref.shape[1]

    sd = sd_ref[...]
    src = sd[0:1, :]
    dst = sd[1:2, :]
    iota = lax.broadcasted_iota(jnp.int32, (n_pad, te), 0)     # shared for both one-hots
    s_t = (iota == src).astype(jnp.float32)
    d_t = (iota == dst).astype(jnp.float32)

    # fused gather of [entity_rank ; den_rowsum] at src: one (2,N_pad)x(N_pad,TE) dot
    g = jnp.dot(nodevals_ref[...], s_t, preferred_element_type=jnp.float32)    # (2, TE)
    er_gather = g[0:1, :]
    den_edge = jnp.where(g[1:2, :] == 0.0, 1.0, g[1:2, :])
    num = rel_ref[...] * er_gather / den_edge                                  # (1, TE)

    @pl.when(t == 0)
    def _():
        er_ref[...] = jnp.zeros_like(er_ref)
        sm_ref[...] = jnp.zeros_like(sm_ref)

    er_ref[...] += _scatter_sum(num, d_t)                                      # 'in' scatter @ dst

    @pl.when(t == pl.num_programs(0) - 1)
    def _():
        er_new = 1.0 - d_damp + d_damp * er_ref[...]                           # (1, N_pad)
        er_ref[...] = er_new
        node_valid = lax.broadcasted_iota(jnp.int32, (1, n_pad), 1) < n_real
        er_m = jnp.where(node_valid, er_new, -1e30)                            # mask padded nodes
        m = jnp.max(er_m, axis=1, keepdims=True)
        ex = jnp.where(node_valid, jnp.exp(er_m - m), 0.0)
        sm_ref[...] = ex / jnp.sum(ex, axis=1, keepdims=True)                  # softmax, real nodes


# -------- phase 4: edge_w scatter -> h_prime (node-tiled, parallel), normalize, ELU --------
def _phase4_kernel(ee_ref, em_ref, sd_ref, sm_ref, ers_ref, h_ref, *, tile_n):
    nt = pl.program_id(0)
    t = pl.program_id(1)
    n_pad = sm_ref.shape[1]
    te = ee_ref.shape[1]

    sd = sd_ref[...]
    src = sd[0:1, :]
    dst = sd[1:2, :]

    iota_full = lax.broadcasted_iota(jnp.int32, (n_pad, te), 0)
    s_t = (iota_full == src).astype(jnp.float32)                 # full range: gather sm[src]
    if tile_n == n_pad:
        iota_slab = iota_full                                    # reuse (single node tile)
    else:
        iota_slab = lax.broadcasted_iota(jnp.int32, (tile_n, te), 0) + nt * tile_n
    d_t = (iota_slab == dst).astype(jnp.float32)                 # slab range: scatter over dst

    sm_edge = jnp.dot(sm_ref[...], s_t, preferred_element_type=jnp.float32)   # (1, TE)
    edge_w = (sm_edge * ee_ref[...]) * em_ref[...]                             # (out, TE)

    @pl.when(t == 0)
    def _():
        h_ref[...] = jnp.zeros_like(h_ref)

    h_ref[...] += _scatter_sum(edge_w, d_t)                                    # (out, TILE_N)

    @pl.when(t == pl.num_programs(1) - 1)
    def _():
        h = h_ref[...] / ers_ref[...]
        h_ref[...] = jnp.where(h > 0, h, _expm1_neg(jnp.minimum(h, 0.0)))      # ELU (concat=True)


def sp_graph_attention_layer(x, edge, edge_embed, entity_rank, a, a_2,
                             *, alpha=0.2, d_damp=0.85, tile_e=512, tile_n=None,
                             vmem_limit_bytes=32 * 1024 * 1024):
    """confidence == False, concat == True forward path.

    tile_e / vmem_limit_bytes are the generation-aware knobs: on v5e/v6e (128 MiB
    physical VMEM) raise vmem_limit_bytes to 64-96 MiB and tile_e to 1024+; on v7x
    (64 MiB physical) keep the defaults.  tile_e is auto-capped by a VMEM budget.
    """
    f32 = jnp.float32
    n_nodes, in_features = x.shape
    nrela = edge_embed.shape[1]
    n_edges = edge.shape[1]
    out_features = a.shape[0]

    # ---- lane-dense node dim (multiple of 128); padded rows/cols stay zero ----
    n_pad = max(128, pl.cdiv(n_nodes, 128) * 128)

    # ---- edge tile: tunable, capped so the per-step footprint fits VMEM ----
    per_col_bytes = 8 * n_pad + 16 * (out_features + nrela + 8)   # 2 one-hots + 2x-buffered streams
    budget = max(1 << 20, int(0.6 * vmem_limit_bytes))
    cap = max(128, (budget // per_col_bytes) // 128 * 128)
    tile_e = int(min(max(128, tile_e), cap))
    e_pad = pl.cdiv(n_edges, tile_e) * tile_e
    pad_e = e_pad - n_edges

    # ---- node tile for the phase-4 scatter (v7x: second TC gets half the slabs) ----
    if tile_n is None:
        tile_n = min(n_pad, 512)
    tile_n = int(min(max(128, (tile_n // 128) * 128), n_pad))
    while n_pad % tile_n:
        tile_n -= 128

    # ---- host glue (tiny): pack indices, pad, pre-project x through a ----
    src = edge[0].astype(jnp.int32)
    dst = edge[1].astype(jnp.int32)
    sd = jnp.stack([src, dst], axis=0)                                   # (2, E)
    sd = jnp.pad(sd, ((0, 0), (0, pad_e)), constant_values=n_nodes)      # sentinel idx = n_nodes

    erel_t = jnp.pad(edge_embed.astype(f32).T, ((0, 0), (0, pad_e)))     # (nrela, E_pad)

    x_pad_t = jnp.pad(x.astype(f32), ((0, n_pad - n_nodes), (0, 0))).T   # (F, N_pad)
    a_mat = a.astype(f32)
    ax_src = a_mat[:, :in_features] @ x_pad_t                            # (out, N_pad)
    ax_dst = a_mat[:, in_features:2 * in_features] @ x_pad_t             # (out, N_pad)
    a_rel = a_mat[:, 2 * in_features:]                                   # (out, nrela)
    a2_col = a_2.astype(f32).reshape(out_features, 1)                    # (out, 1)
    er_row = jnp.pad(entity_rank.astype(f32), (0, n_pad - n_nodes)).reshape(1, n_pad)

    grid_e = (e_pad // tile_e,)
    cp = pltpu.CompilerParams(dimension_semantics=("arbitrary",),
                              vmem_limit_bytes=vmem_limit_bytes)

    def etile(rows):
        return pl.BlockSpec((rows, tile_e), lambda t: (0, t))

    def whole(shape):
        return pl.BlockSpec(shape, lambda t: (0,) * len(shape))

    # phase 1
    edge_m_t, edge_e, e_rowsum = pl.pallas_call(
        functools.partial(_phase1_kernel, alpha=float(alpha), n_real=int(n_nodes)),
        grid=grid_e,
        in_specs=[etile(nrela), etile(2),
                  whole((out_features, n_pad)), whole((out_features, n_pad)),
                  whole((out_features, nrela)), whole((out_features, 1))],
        out_specs=(etile(out_features), etile(1), whole((1, n_pad))),
        out_shape=(jax.ShapeDtypeStruct((out_features, e_pad), f32),
                   jax.ShapeDtypeStruct((1, e_pad), f32),
                   jax.ShapeDtypeStruct((1, n_pad), f32)),
        compiler_params=cp,
    )(erel_t, sd, ax_src, ax_dst, a_rel, a2_col)

    # phase 2
    rel, den_rowsum = pl.pallas_call(
        _phase2_kernel,
        grid=grid_e,
        in_specs=[etile(1), etile(2), whole((1, n_pad))],
        out_specs=(etile(1), whole((1, n_pad))),
        out_shape=(jax.ShapeDtypeStruct((1, e_pad), f32),
                   jax.ShapeDtypeStruct((1, n_pad), f32)),
        compiler_params=cp,
    )(edge_e, sd, e_rowsum)

    # phase 3 (fuse the two node vectors gathered by src into one (2, N_pad) operand)
    node_vals = jnp.concatenate([er_row, den_rowsum], axis=0)            # (2, N_pad)
    er_new, sm = pl.pallas_call(
        functools.partial(_phase3_kernel, d_damp=float(d_damp), n_real=int(n_nodes)),
        grid=grid_e,
        in_specs=[etile(1), etile(2), whole((2, n_pad))],
        out_specs=(whole((1, n_pad)), whole((1, n_pad))),
        out_shape=(jax.ShapeDtypeStruct((1, n_pad), f32),
                   jax.ShapeDtypeStruct((1, n_pad), f32)),
        compiler_params=cp,
    )(rel, sd, node_vals)

    # phase 4 (h produced lane-dense as (out, N_pad); node-tiled "parallel" outer axis)
    grid4 = (n_pad // tile_n, e_pad // tile_e)
    cp4 = pltpu.CompilerParams(dimension_semantics=("parallel", "arbitrary"),
                               vmem_limit_bytes=vmem_limit_bytes)

    def etile4(rows):
        return pl.BlockSpec((rows, tile_e), lambda nt, t: (0, t))

    h_t = pl.pallas_call(
        functools.partial(_phase4_kernel, tile_n=tile_n),
        grid=grid4,
        in_specs=[etile4(1), etile4(out_features), etile4(2),
                  pl.BlockSpec((1, n_pad), lambda nt, t: (0, 0)),
                  pl.BlockSpec((1, tile_n), lambda nt, t: (0, nt))],
        out_specs=pl.BlockSpec((out_features, tile_n), lambda nt, t: (0, nt)),
        out_shape=jax.ShapeDtypeStruct((out_features, n_pad), f32),
        compiler_params=cp4,
    )(edge_e, edge_m_t, sd, sm, e_rowsum)

    return h_t[:, :n_nodes].T, er_new[0, :n_nodes]


def reference(x, edge, edge_embed, entity_rank, a, a_2, *, alpha=0.2, d_damp=0.85):
    """Pure-JAX mirror of the PyTorch forward (confidence=False path) for checking."""
    N = x.shape[0]
    src, dst = edge[0], edge[1]
    edge_h = jnp.concatenate([x[src], x[dst], edge_embed], axis=1)
    edge_m = _leaky_relu(edge_h @ a.T, alpha)                         # (E, out)
    powers = -_leaky_relu(edge_m @ a_2.T, alpha)[:, 0]                # (E,)
    edge_e = jnp.exp(powers)
    e_rowsum = jax.ops.segment_sum(edge_e, dst, N)
    e_rowsum = jnp.where(e_rowsum == 0.0, 1e-12, e_rowsum)
    rel = edge_e / e_rowsum[src]
    den = jax.ops.segment_sum(rel, src, N)
    den = jnp.where(den == 0.0, 1e-12, den)
    num = rel * entity_rank[src] / den[src]
    er_new = 1.0 - d_damp + d_damp * jax.ops.segment_sum(num, dst, N)
    sm = jax.nn.softmax(er_new, axis=0)
    edge_w = (sm[src] * edge_e)[:, None] * edge_m
    h = jax.ops.segment_sum(edge_w, dst, N) / e_rowsum[:, None]
    return jax.nn.elu(h), er_new


if __name__ == "__main__":
    # small, deterministic problem: 24 nodes (-> padded to 128 lanes),
    # 1200 edges (-> padded to 1536 -> 3 edge tiles of 512).
    num_nodes = 24
    in_features = 8
    out_features = 8
    nrela_dim = 4
    num_edges = 1200
    alpha = 0.2
    d_damp = 0.85

    key = jax.random.PRNGKey(0)
    k_x, k_e, k_emb, k_er, k_a, k_a2 = jax.random.split(key, 6)

    x = jax.random.normal(k_x, (num_nodes, in_features), dtype=jnp.float32)
    edge = jax.random.randint(k_e, (2, num_edges), 0, num_nodes, dtype=jnp.int32)
    edge_embed = jax.random.normal(k_emb, (num_edges, nrela_dim), dtype=jnp.float32)
    entity_rank = jax.random.uniform(k_er, (num_nodes,), dtype=jnp.float32,
                                     minval=0.5, maxval=1.5)

    # parameters (xavier_normal_, gain=1.414), deterministic
    f2 = 2 * in_features + nrela_dim
    std_a = 1.414 * float(np.sqrt(2.0 / (f2 + out_features)))
    a = std_a * jax.random.normal(k_a, (out_features, f2), dtype=jnp.float32)
    std_a2 = 1.414 * float(np.sqrt(2.0 / (out_features + 1)))
    a_2 = std_a2 * jax.random.normal(k_a2, (1, out_features), dtype=jnp.float32)

    h_prime, er_new = sp_graph_attention_layer(
        x, edge, edge_embed, entity_rank, a, a_2, alpha=alpha, d_damp=d_damp)
    h_prime = jax.block_until_ready(h_prime)
    er_new = jax.block_until_ready(er_new)

    h_ref, er_ref = reference(
        x, edge, edge_embed, entity_rank, a, a_2, alpha=alpha, d_damp=d_damp)

    assert not np.isnan(np.asarray(h_prime)).any()
    np.testing.assert_allclose(np.asarray(h_prime), np.asarray(h_ref), rtol=5e-5, atol=5e-5)
    np.testing.assert_allclose(np.asarray(er_new), np.asarray(er_ref), rtol=5e-5, atol=5e-5)

    print("KERNEL_OK")
</pallas_src>

<mosaic_0001>
module attributes {stable_mosaic.version = 11 : i64} {
  func.func @_phase1_kernel(%arg0: i32, %arg1: memref<4x512xf32, #tpu.memory_space<vmem>>, %arg2: memref<2x512xi32, #tpu.memory_space<vmem>>, %arg3: memref<8x128xf32, #tpu.memory_space<vmem>>, %arg4: memref<8x128xf32, #tpu.memory_space<vmem>>, %arg5: memref<8x4xf32, #tpu.memory_space<vmem>>, %arg6: memref<8x1xf32, #tpu.memory_space<vmem>>, %arg7: memref<8x512xf32, #tpu.memory_space<vmem>>, %arg8: memref<1x512xf32, #tpu.memory_space<vmem>>, %arg9: memref<1x128xf32, #tpu.memory_space<vmem>>) attributes {dimension_semantics = [#tpu.dimension_semantics<arbitrary>], iteration_bounds = array<i64: 3>, scalar_prefetch = 0 : i64, scratch_operands = 0 : i64, tpu.core_type = #tpu.core_type<tc>, window_params = [{transform_indices = @transform_0, window_bounds = array<i64: 4, 512>}, {transform_indices = @transform_1, window_bounds = array<i64: 2, 512>}, {pipeline_mode = #tpu.pipeline_mode<synchronous>, transform_indices = @transform_2, window_bounds = array<i64: 8, 128>}, {pipeline_mode = #tpu.pipeline_mode<synchronous>, transform_indices = @transform_3, window_bounds = array<i64: 8, 128>}, {pipeline_mode = #tpu.pipeline_mode<synchronous>, transform_indices = @transform_4, window_bounds = array<i64: 8, 4>}, {pipeline_mode = #tpu.pipeline_mode<synchronous>, transform_indices = @transform_5, window_bounds = array<i64: 8, 1>}, {transform_indices = @transform_6, window_bounds = array<i64: 8, 512>}, {transform_indices = @transform_7, window_bounds = array<i64: 1, 512>}, {pipeline_mode = #tpu.pipeline_mode<synchronous>, transform_indices = @transform_8, window_bounds = array<i64: 1, 128>}]} {
    %c0 = arith.constant 0 : index
    %c0_0 = arith.constant 0 : index
    %0 = vector.load %arg2[%c0, %c0_0] : memref<2x512xi32, #tpu.memory_space<vmem>>, vector<2x512xi32>
    %1 = vector.extract_strided_slice %0 {offsets = [0, 0], sizes = [1, 512], strides = [1, 1]} : vector<2x512xi32> to vector<1x512xi32>
    %2 = vector.extract_strided_slice %0 {offsets = [1, 0], sizes = [1, 512], strides = [1, 1]} : vector<2x512xi32> to vector<1x512xi32>
    %3 = tpu.iota {dimensions = array<i32: 0>} : vector<128x512xi32>
    %4 = vector.broadcast %1 : vector<1x512xi32> to vector<128x512xi32>
    %5 = arith.cmpi eq, %3, %4 : vector<128x512xi32>
    %6 = arith.extui %5 : vector<128x512xi1> to vector<128x512xi32>
    %7 = arith.sitofp %6 : vector<128x512xi32> to vector<128x512xf32>
    %8 = vector.broadcast %2 : vector<1x512xi32> to vector<128x512xi32>
    %9 = arith.cmpi eq, %3, %8 : vector<128x512xi32>
    %10 = arith.extui %9 : vector<128x512xi1> to vector<128x512xi32>
    %11 = arith.sitofp %10 : vector<128x512xi32> to vector<128x512xf32>
    %c0_1 = arith.constant 0 : index
    %c0_2 = arith.constant 0 : index
    %12 = vector.load %arg3[%c0_1, %c0_2] : memref<8x128xf32, #tpu.memory_space<vmem>>, vector<8x128xf32>
    %cst = arith.constant dense<0.000000e+00> : vector<8x512xf32>
    %13 = tpu.matmul %12, %7, %cst {dimension_numbers = #tpu.dot_dimension_numbers<[1], [0], [0], [1], [0, 0, 1, 1], [], []>} : vector<8x128xf32>, vector<128x512xf32>, vector<8x512xf32> -> vector<8x512xf32>
    %c0_3 = arith.constant 0 : index
    %c0_4 = arith.constant 0 : index
    %14 = vector.load %arg4[%c0_3, %c0_4] : memref<8x128xf32, #tpu.memory_space<vmem>>, vector<8x128xf32>
    %cst_5 = arith.constant dense<0.000000e+00> : vector<8x512xf32>
    %15 = tpu.matmul %14, %11, %cst_5 {dimension_numbers = #tpu.dot_dimension_numbers<[1], [0], [0], [1], [0, 0, 1, 1], [], []>} : vector<8x128xf32>, vector<128x512xf32>, vector<8x512xf32> -> vector<8x512xf32>
    %16 = arith.addf %13, %15 : vector<8x512xf32>
    %c0_6 = arith.constant 0 : index
    %c0_7 = arith.constant 0 : index
    %17 = vector.load %arg5[%c0_6, %c0_7] : memref<8x4xf32, #tpu.memory_space<vmem>>, vector<8x4xf32>
    %c0_8 = arith.constant 0 : index
    %c0_9 = arith.constant 0 : index
    %18 = vector.load %arg1[%c0_8, %c0_9] : memref<4x512xf32, #tpu.memory_space<vmem>>, vector<4x512xf32>
    %cst_10 = arith.constant dense<0.000000e+00> : vector<8x512xf32>
    %19 = tpu.matmul %17, %18, %cst_10 {dimension_numbers = #tpu.dot_dimension_numbers<[1], [0], [0], [1], [0, 0, 1, 1], [], []>} : vector<8x4xf32>, vector<4x512xf32>, vector<8x512xf32> -> vector<8x512xf32>
    %20 = arith.addf %16, %19 : vector<8x512xf32>
    %cst_11 = arith.constant 0.000000e+00 : f32
    %21 = vector.broadcast %cst_11 : f32 to vector<8x512xf32>
    %22 = arith.cmpf ogt, %20, %21 : vector<8x512xf32>
    %cst_12 = arith.constant 2.000000e-01 : f32
    %23 = vector.broadcast %cst_12 : f32 to vector<8x512xf32>
    %24 = arith.mulf %23, %20 : vector<8x512xf32>
    %25 = arith.select %22, %20, %24 : vector<8x512xi1>, vector<8x512xf32>
    %c0_13 = arith.constant 0 : index
    %c0_14 = arith.constant 0 : index
    %26 = vector.load %arg7[%c0_13, %c0_14] : memref<8x512xf32, #tpu.memory_space<vmem>>, vector<8x512xf32>
    tpu.vector_store %arg7[%c0_13, %c0_14], %25 {strides = array<i32>} : memref<8x512xf32, #tpu.memory_space<vmem>>, vector<8x512xf32>,
    %c0_15 = arith.constant 0 : index
    %c0_16 = arith.constant 0 : index
    %27 = vector.load %arg6[%c0_15, %c0_16] : memref<8x1xf32, #tpu.memory_space<vmem>>, vector<8x1xf32>
    %28 = vector.broadcast %27 : vector<8x1xf32> to vector<8x512xf32>
    %29 = arith.mulf %25, %28 : vector<8x512xf32>
    %cst_17 = arith.constant dense<0.000000e+00> : vector<512xf32>
    %30 = vector.multi_reduction <add>, %29, %cst_17 [0] : vector<8x512xf32> to vector<512xf32>
    %31 = vector.shape_cast %30 : vector<512xf32> to vector<1x512xf32>
    %cst_18 = arith.constant 0.000000e+00 : f32
    %32 = vector.broadcast %cst_18 : f32 to vector<1x512xf32>
    %33 = arith.cmpf ogt, %31, %32 : vector<1x512xf32>
    %cst_19 = arith.constant 2.000000e-01 : f32
    %34 = vector.broadcast %cst_19 : f32 to vector<1x512xf32>
    %35 = arith.mulf %34, %31 : vector<1x512xf32>
    %36 = arith.select %33, %31, %35 : vector<1x512xi1>, vector<1x512xf32>
    %cst_20 = arith.constant 0.000000e+00 : f32
    %37 = vector.broadcast %cst_20 : f32 to vector<1x512xf32>
    %38 = arith.subf %37, %36 : vector<1x512xf32>
    %c24_i32 = arith.constant 24 : i32
    %39 = vector.broadcast %c24_i32 : i32 to vector<1x512xi32>
    %40 = arith.cmpi slt, %2, %39 : vector<1x512xi32>
    %41 = math.exp %38 : vector<1x512xf32>
    %cst_21 = arith.constant 0.000000e+00 : f32
    %42 = vector.broadcast %cst_21 : f32 to vector<1x512xf32>
    %43 = arith.select %40, %41, %42 : vector<1x512xi1>, vector<1x512xf32>
    %c0_22 = arith.constant 0 : index
    %c0_23 = arith.constant 0 : index
    %44 = vector.load %arg8[%c0_22, %c0_23] : memref<1x512xf32, #tpu.memory_space<vmem>>, vector<1x512xf32>
    tpu.vector_store %arg8[%c0_22, %c0_23], %43 {strides = array<i32>} : memref<1x512xf32, #tpu.memory_space<vmem>>, vector<1x512xf32>,
    %c0_i32 = arith.constant 0 : i32
    %45 = arith.cmpi eq, %arg0, %c0_i32 : i32
    %46 = arith.extui %45 : i1 to i32
    %c0_i32_24 = arith.constant 0 : i32
    %47 = arith.cmpi ne, %46, %c0_i32_24 : i32
    scf.if %47 {
      %cst_31 = arith.constant 0.000000e+00 : f32
      %55 = vector.broadcast %cst_31 : f32 to vector<1x128xf32>
      %c0_32 = arith.constant 0 : index
      %c0_33 = arith.constant 0 : index
      %56 = vector.load %arg9[%c0_32, %c0_33] : memref<1x128xf32, #tpu.memory_space<vmem>>, vector<1x128xf32>
      tpu.vector_store %arg9[%c0_32, %c0_33], %55 {strides = array<i32>} : memref<1x128xf32, #tpu.memory_space<vmem>>, vector<1x128xf32>,
    } else {
    }
    %c0_25 = arith.constant 0 : index
    %c0_26 = arith.constant 0 : index
    %48 = vector.load %arg9[%c0_25, %c0_26] : memref<1x128xf32, #tpu.memory_space<vmem>>, vector<1x128xf32>
    %cst_27 = arith.constant dense<0.000000e+00> : vector<1x128xf32>
    %49 = tpu.matmul %43, %11, %cst_27 {dimension_numbers = #tpu.dot_dimension_numbers<[1], [1], [0], [0], [0, 0, 1, 0], [], []>} : vector<1x512xf32>, vector<128x512xf32>, vector<1x128xf32> -> vector<1x128xf32>
    %50 = arith.addf %48, %49 : vector<1x128xf32>
    %c0_28 = arith.constant 0 : index
    %c0_29 = arith.constant 0 : index
    %51 = vector.load %arg9[%c0_28, %c0_29] : memref<1x128xf32, #tpu.memory_space<vmem>>, vector<1x128xf32>
    tpu.vector_store %arg9[%c0_28, %c0_29], %50 {strides = array<i32>} : memref<1x128xf32, #tpu.memory_space<vmem>>, vector<1x128xf32>,
    %c2_i32 = arith.constant 2 : i32
    %52 = arith.cmpi eq, %arg0, %c2_i32 : i32
    %53 = arith.extui %52 : i1 to i32
    %c0_i32_30 = arith.constant 0 : i32
    %54 = arith.cmpi ne, %53, %c0_i32_30 : i32
    scf.if %54 {
      %c0_31 = arith.constant 0 : index
      %c0_32 = arith.constant 0 : index
      %55 = vector.load %arg9[%c0_31, %c0_32] : memref<1x128xf32, #tpu.memory_space<vmem>>, vector<1x128xf32>
      %cst_33 = arith.constant 0.000000e+00 : f32
      %56 = vector.broadcast %cst_33 : f32 to vector<1x128xf32>
      %57 = arith.cmpf oeq, %55, %56 : vector<1x128xf32>
      %c0_34 = arith.constant 0 : index
      %c0_35 = arith.constant 0 : index
      %58 = vector.load %arg9[%c0_34, %c0_35] : memref<1x128xf32, #tpu.memory_space<vmem>>, vector<1x128xf32>
      %cst_36 = arith.constant 9.99999996E-13 : f32
      %59 = vector.broadcast %cst_36 : f32 to vector<1x128xf32>
      %60 = arith.select %57, %59, %58 : vector<1x128xi1>, vector<1x128xf32>
      %c0_37 = arith.constant 0 : index
      %c0_38 = arith.constant 0 : index
      %61 = vector.load %arg9[%c0_37, %c0_38] : memref<1x128xf32, #tpu.memory_space<vmem>>, vector<1x128xf32>
      tpu.vector_store %arg9[%c0_37, %c0_38], %60 {strides = array<i32>} : memref<1x128xf32, #tpu.memory_space<vmem>>, vector<1x128xf32>,
    } else {
    }
    return
  }
  func.func @transform_0(%arg0: i32) -> (i32, i32) {
    %c0_i32 = arith.constant 0 : i32
    %c0_i32_0 = arith.constant 0 : i32
    return %c0_i32, %arg0 : i32, i32
  }
  func.func @transform_1(%arg0: i32) -> (i32, i32) {
    %c0_i32 = arith.constant 0 : i32
    %c0_i32_0 = arith.constant 0 : i32
    return %c0_i32, %arg0 : i32, i32
  }
  func.func @transform_2(%arg0: i32) -> (i32, i32) {
    %c0_i32 = arith.constant 0 : i32
    %c0_i32_0 = arith.constant 0 : i32
    %c0_i32_1 = arith.constant 0 : i32
    return %c0_i32, %c0_i32_0 : i32, i32
  }
  func.func @transform_3(%arg0: i32) -> (i32, i32) {
    %c0_i32 = arith.constant 0 : i32
    %c0_i32_0 = arith.constant 0 : i32
    %c0_i32_1 = arith.constant 0 : i32
    return %c0_i32, %c0_i32_0 : i32, i32
  }
  func.func @transform_4(%arg0: i32) -> (i32, i32) {
    %c0_i32 = arith.constant 0 : i32
    %c0_i32_0 = arith.constant 0 : i32
    %c0_i32_1 = arith.constant 0 : i32
    return %c0_i32, %c0_i32_0 : i32, i32
  }
  func.func @transform_5(%arg0: i32) -> (i32, i32) {
    %c0_i32 = arith.constant 0 : i32
    %c0_i32_0 = arith.constant 0 : i32
    %c0_i32_1 = arith.constant 0 : i32
    return %c0_i32, %c0_i32_0 : i32, i32
  }
  func.func @transform_6(%arg0: i32) -> (i32, i32) {
    %c0_i32 = arith.constant 0 : i32
    %c0_i32_0 = arith.constant 0 : i32
    return %c0_i32, %arg0 : i32, i32
  }
  func.func @transform_7(%arg0: i32) -> (i32, i32) {
    %c0_i32 = arith.constant 0 : i32
    %c0_i32_0 = arith.constant 0 : i32
    return %c0_i32, %arg0 : i32, i32
  }
  func.func @transform_8(%arg0: i32) -> (i32, i32) {
    %c0_i32 = arith.constant 0 : i32
    %c0_i32_0 = arith.constant 0 : i32
    %c0_i32_1 = arith.constant 0 : i32
    return %c0_i32, %c0_i32_0 : i32, i32
  }
}

</mosaic_0001>

<llo_original>
// kernel: tpu_custom_call.1
$region0: #{tpu_custom_call.1}
  #allocation0 [shape = 'u32[]', space=smem, size = 0x4, offset = 0x4, fixed_abs, tag = 'smem constant byte address 0x4 - core index']
  #allocation1 [shape = 'u32[144,128]{1,0:T(1,128)}', space=vmem, size = 0x12000, scoped, tag = 'internal scratch']
  %s0 = inlined_call_operand.hbm [shape: f32[4,1536], index: 0, kind: input, shape index: {}]
  %s1 = inlined_call_operand.hbm [shape: s32[2,1536], index: 1, kind: input, shape index: {}]
  %s2 = inlined_call_operand.vmem [shape: f32[8,128], index: 2, kind: input, shape index: {}]
  %s3 = inlined_call_operand.vmem [shape: f32[8,128], index: 3, kind: input, shape index: {}]
  %s4 = inlined_call_operand.vmem [shape: f32[8,4], index: 4, kind: input, shape index: {}]
  %s5 = inlined_call_operand.vmem [shape: f32[8,1], index: 5, kind: input, shape index: {}]
  %s6 = inlined_call_operand.hbm [shape: f32[8,1536], index: 6, kind: output, shape index: {0}]
  %s7 = inlined_call_operand.hbm [shape: f32[1,1536], index: 7, kind: output, shape index: {1}]
  %s8 = inlined_call_operand.hbm [shape: f32[1,128], index: 8, kind: output, shape index: {2}]
  %9 = xla_tuple %s6, %s7, %s8
  %s10 = sld [smem:[#allocation0]]
  $region89: #{tpu_custom_call.1} parent=0
    _
  %s12 = ssub.s32 1, %s10
  %s13 = scalar_select 0, %s12, %s10
  $region1: #{tpu_custom_call.1} parent=0
    #allocation2 [shape = 'u8[16384]{0}', space=vmem, size = 0x4000, scoped, tag = 'input window, operand 0']
    #allocation3 [shape = 's32[2]{0}', space=sflag, size = 0x8, scoped, tag = 'scoped memory for tpu_custom_call.1']
    #allocation4 [shape = 's32[2]{0}', space=sflag, size = 0x8, scoped, tag = 'scoped memory for tpu_custom_call.1']
    #allocation5 [shape = 'u8[8192]{0}', space=vmem, size = 0x2000, scoped, tag = 'input window, operand 1']
    #allocation6 [shape = 's32[2]{0}', space=sflag, size = 0x8, scoped, tag = 'scoped memory for tpu_custom_call.1']
    #allocation7 [shape = 'u8[32768]{0}', space=vmem, size = 0x8000, scoped, tag = 'output window, operand 0']
    #allocation8 [shape = 'u8[4096]{0}', space=vmem, size = 0x1000, scoped, tag = 'output window, operand 1']
    #allocation9 [shape = 's32[2]{0}', space=sflag, size = 0x8, scoped, tag = 'scoped memory for tpu_custom_call.1']
    #allocation10 [shape = 'u8[512]{0}', space=vmem, size = 0x400, scoped, tag = 'output window, operand 2, single buffered']
    %14 = vsyncpa [#allocation3], 0
    %s15 = scalar_lea.sflag [#allocation3], 1
    %16 = vsyncpa %s15, 0
    %17 = vsyncpa [#allocation6], 0
    %s18 = scalar_lea.sflag [#allocation6], 1
    %19 = vsyncpa %s18, 0
    %20 = vsyncpa [#allocation4], 0
    %s21 = scalar_lea.sflag [#allocation4], 1
    %22 = vsyncpa %s21, 0
    %23 = vsyncpa [#allocation9], 0
    %s24 = scalar_lea.sflag [#allocation9], 1
    %25 = vsyncpa %s24, 0
    loop: start=0, step=1, limit=5
    $region2: #{tpu_custom_call.1} parent=1 // loop_pre_header
      _
    $region3: #{tpu_custom_call.1} parent=1 // loop_header
      %s27 = sphi 0, %s31
      %p28 = scmp.ge.s32.totalorder %s27, 5
      %s37 = sphi 0, %s39
      %s40 = sphi 0, %s37
      %s41 = sphi 0, %s40
      %s57 = sphi 0, %s41
      %s63 = sphi 0, %s65
      %s66 = sphi 0, %s63
      %s67 = sphi 0, %s66
      %s83 = sphi 0, %s67
      %s87 = sphi 0, %s87
      %s89 = sphi 0, %s87
      %s90 = sphi 0, %s89
      %s104 = sphi 0, %s90
      %s108 = sphi 0, %s108
      %s110 = sphi 0, %s108
      %s111 = sphi 0, %s110
      %s125 = sphi 0, %s111
      %s129 = sphi 0, %s129
      %s131 = sphi 0, %s129
      %s132 = sphi 0, %s131
      %s146 = sphi 0, %s132
      %s150 = sphi 0, %s150
      %s152 = sphi 0, %s150
      %s153 = sphi 0, %s152
      %s167 = sphi 0, %s153
      %s173 = sphi 0, %s175
      %s176 = sphi 0, %s173
      %s177 = sphi 0, %s176
      %s193 = sphi 0, %s177
      %s199 = sphi 0, %s201
      %s202 = sphi 0, %s199
      %s203 = sphi 0, %s202
      %s219 = sphi 0, %s203
      %s223 = sphi 0, %s223
      %s225 = sphi 0, %s223
      %s226 = sphi 0, %s225
      %s240 = sphi 0, %s226
    $region4: #{tpu_custom_call.1} parent=1 // loop_header_branch
      %30 = sbr.rel (%p28) target = $region8
    $region5: #{tpu_custom_call.1} parent=1 // loop_body
      %s32 = ssub.s32 %s27, 1
      %s33 = ssub.s32 %s27, 2
      %s34 = sadd.s32 %s27, 1
      %s35 = ssub.s32 %s27, %s34
      %p36 = scmp.eq.s32.totalorder %s35, 0
      %s38 = sadd.s32 %s37, 1
      %s39 = scalar_select %p36, %s37, %s38
      %p42 = pneg %p36
      %p43 = scmp.eq.s32.totalorder %s27, 2
      %p44 = por %p42, %p43
      %p45 = scmp.ne.s32.totalorder %s37, %s40
      %p46 = scmp.eq.s32.totalorder %s27, 0
      %p47 = por %p45, %p46
      %p48 = scmp.ne.s32.totalorder %s37, %s40
      %p49 = scmp.eq.s32.totalorder %s32, 2
      %p50 = por %p48, %p49
      %p51 = scmp.ne.s32.totalorder %s40, %s41
      %p52 = scmp.eq.s32.totalorder %s32, 0
      %p53 = por %p51, %p52
      %p54 = scmp.ne.s32.totalorder %s40, %s41
      %p55 = scmp.eq.s32.totalorder %s33, 2
      %p56 = por %p54, %p55
      %p58 = scmp.ne.s32.totalorder %s41, %s57
      %p59 = scmp.eq.s32.totalorder %s33, 0
      %p60 = por %p58, %p59
      %s61 = ssub.s32 %s27, %s34
      %p62 = scmp.eq.s32.totalorder %s61, 0
      %s64 = sadd.s32 %s63, 1
      %s65 = scalar_select %p62, %s63, %s64
      %p68 = pneg %p62
      %p69 = scmp.eq.s32.totalorder %s27, 2
      %p70 = por %p68, %p69
      %p71 = scmp.ne.s32.totalorder %s63, %s66
      %p72 = scmp.eq.s32.totalorder %s27, 0
      %p73 = por %p71, %p72
      %p74 = scmp.ne.s32.totalorder %s63, %s66
      %p75 = scmp.eq.s32.totalorder %s32, 2
      %p76 = por %p74, %p75
      %p77 = scmp.ne.s32.totalorder %s66, %s67
      %p78 = scmp.eq.s32.totalorder %s32, 0
      %p79 = por %p77, %p78
      %p80 = scmp.ne.s32.totalorder %s66, %s67
      %p81 = scmp.eq.s32.totalorder %s33, 2
      %p82 = por %p80, %p81
      %p84 = scmp.ne.s32.totalorder %s67, %s83
      %p85 = scmp.eq.s32.totalorder %s33, 0
      %p86 = por %p84, %p85
      %s88 = sadd.s32 %s87, 1
      %p91 = scmp.eq.s32.totalorder %s27, 2
      %p92 = scmp.ne.s32.totalorder %s87, %s89
      %p93 = scmp.eq.s32.totalorder %s27, 0
      %p94 = por %p92, %p93
      %p95 = scmp.ne.s32.totalorder %s87, %s89
      %p96 = scmp.eq.s32.totalorder %s32, 2
      %p97 = por %p95, %p96
      %p98 = scmp.ne.s32.totalorder %s89, %s90
      %p99 = scmp.eq.s32.totalorder %s32, 0
      %p100 = por %p98, %p99
      %p101 = scmp.ne.s32.totalorder %s89, %s90
      %p102 = scmp.eq.s32.totalorder %s33, 2
      %p103 = por %p101, %p102
      %p105 = scmp.ne.s32.totalorder %s90, %s104
      %p106 = scmp.eq.s32.totalorder %s33, 0
      %p107 = por %p105, %p106
      %s109 = sadd.s32 %s108, 1
      %p112 = scmp.eq.s32.totalorder %s27, 2
      %p113 = scmp.ne.s32.totalorder %s108, %s110
      %p114 = scmp.eq.s32.totalorder %s27, 0
      %p115 = por %p113, %p114
      %p116 = scmp.ne.s32.totalorder %s108, %s110
      %p117 = scmp.eq.s32.totalorder %s32, 2
      %p118 = por %p116, %p117
      %p119 = scmp.ne.s32.totalorder %s110, %s111
      %p120 = scmp.eq.s32.totalorder %s32, 0
      %p121 = por %p119, %p120
      %p122 = scmp.ne.s32.totalorder %s110, %s111
      %p123 = scmp.eq.s32.totalorder %s33, 2
      %p124 = por %p122, %p123
      %p126 = scmp.ne.s32.totalorder %s111, %s125
      %p127 = scmp.eq.s32.totalorder %s33, 0
      %p128 = por %p126, %p127
      %s130 = sadd.s32 %s129, 1
      %p133 = scmp.eq.s32.totalorder %s27, 2
      %p134 = scmp.ne.s32.totalorder %s129, %s131
      %p135 = scmp.eq.s32.totalorder %s27, 0
      %p136 = por %p134, %p135
      %p137 = scmp.ne.s32.totalorder %s129, %s131
      %p138 = scmp.eq.s32.totalorder %s32, 2
      %p139 = por %p137, %p138
      %p140 = scmp.ne.s32.totalorder %s131, %s132
      %p141 = scmp.eq.s32.totalorder %s32, 0
      %p142 = por %p140, %p141
      %p143 = scmp.ne.s32.totalorder %s131, %s132
      %p144 = scmp.eq.s32.totalorder %s33, 2
      %p145 = por %p143, %p144
      %p147 = scmp.ne.s32.totalorder %s132, %s146
      %p148 = scmp.eq.s32.totalorder %s33, 0
      %p149 = por %p147, %p148
      %s151 = sadd.s32 %s150, 1
      %p154 = scmp.eq.s32.totalorder %s27, 2
      %p155 = scmp.ne.s32.totalorder %s150, %s152
      %p156 = scmp.eq.s32.totalorder %s27, 0
      %p157 = por %p155, %p156
      %p158 = scmp.ne.s32.totalorder %s150, %s152
      %p159 = scmp.eq.s32.totalorder %s32, 2
      %p160 = por %p158, %p159
      %p161 = scmp.ne.s32.totalorder %s152, %s153
      %p162 = scmp.eq.s32.totalorder %s32, 0
      %p163 = por %p161, %p162
      %p164 = scmp.ne.s32.totalorder %s152, %s153
      %p165 = scmp.eq.s32.totalorder %s33, 2
      %p166 = por %p164, %p165
      %p168 = scmp.ne.s32.totalorder %s153, %s167
      %p169 = scmp.eq.s32.totalorder %s33, 0
      %p170 = por %p168, %p169
      %s171 = ssub.s32 %s27, %s34
      %p172 = scmp.eq.s32.totalorder %s171, 0
      %s174 = sadd.s32 %s173, 1
      %s175 = scalar_select %p172, %s173, %s174
      %p178 = pneg %p172
      %p179 = scmp.eq.s32.totalorder %s27, 2
      %p180 = por %p178, %p179
      %p181 = scmp.ne.s32.totalorder %s173, %s176
      %p182 = scmp.eq.s32.totalorder %s27, 0
      %p183 = por %p181, %p182
      %p184 = scmp.ne.s32.totalorder %s173, %s176
      %p185 = scmp.eq.s32.totalorder %s32, 2
      %p186 = por %p184, %p185
      %p187 = scmp.ne.s32.totalorder %s176, %s177
      %p188 = scmp.eq.s32.totalorder %s32, 0
      %p189 = por %p187, %p188
      %p190 = scmp.ne.s32.totalorder %s176, %s177
      %p191 = scmp.eq.s32.totalorder %s33, 2
      %p192 = por %p190, %p191
      %p194 = scmp.ne.s32.totalorder %s177, %s193
      %p195 = scmp.eq.s32.totalorder %s33, 0
      %p196 = por %p194, %p195
      %s197 = ssub.s32 %s27, %s34
      %p198 = scmp.eq.s32.totalorder %s197, 0
      %s200 = sadd.s32 %s199, 1
      %s201 = scalar_select %p198, %s199, %s200
      %p204 = pneg %p198
      %p205 = scmp.eq.s32.totalorder %s27, 2
      %p206 = por %p204, %p205
      %p207 = scmp.ne.s32.totalorder %s199, %s202
      %p208 = scmp.eq.s32.totalorder %s27, 0
      %p209 = por %p207, %p208
      %p210 = scmp.ne.s32.totalorder %s199, %s202
      %p211 = scmp.eq.s32.totalorder %s32, 2
      %p212 = por %p210, %p211
      %p213 = scmp.ne.s32.totalorder %s202, %s203
      %p214 = scmp.eq.s32.totalorder %s32, 0
      %p215 = por %p213, %p214
      %p216 = scmp.ne.s32.totalorder %s202, %s203
      %p217 = scmp.eq.s32.totalorder %s33, 2
      %p218 = por %p216, %p217
      %p220 = scmp.ne.s32.totalorder %s203, %s219
      %p221 = scmp.eq.s32.totalorder %s33, 0
      %p222 = por %p220, %p221
      %s224 = sadd.s32 %s223, 1
      %p227 = scmp.eq.s32.totalorder %s27, 2
      %p228 = scmp.ne.s32.totalorder %s223, %s225
      %p229 = scmp.eq.s32.totalorder %s27, 0
      %p230 = por %p228, %p229
      %p231 = scmp.ne.s32.totalorder %s223, %s225
      %p232 = scmp.eq.s32.totalorder %s32, 2
      %p233 = por %p231, %p232
      %p234 = scmp.ne.s32.totalorder %s225, %s226
      %p235 = scmp.eq.s32.totalorder %s32, 0
      %p236 = por %p234, %p235
      %p237 = scmp.ne.s32.totalorder %s225, %s226
      %p238 = scmp.eq.s32.totalorder %s33, 2
      %p239 = por %p237, %p238
      %p241 = scmp.ne.s32.totalorder %s226, %s240
      %p242 = scmp.eq.s32.totalorder %s33, 0
      %p243 = por %p241, %p242
      %p244 = scmp.le.s32.totalorder 1, %s27
      %p245 = scmp.lt.s32.totalorder %s27, 4
      %p246 = pnand %p244, %p245
      %p247 = pneg %p246
      // Predicated region
      $region9: #{tpu_custom_call.1} parent=5 // pred_check
        _
      $region10: #{tpu_custom_call.1} parent=5 // pred_check_branch
        %249 = sbr.rel (%p246) target = $region12
      $region11: #{tpu_custom_call.1} parent=5 // pred_region
        %s250 = ssub.s32 %s27, 1
        // Predicated region
        $region13: #{tpu_custom_call.1} parent=11 // pred_check
          %p251 = pneg %p100
        $region14: #{tpu_custom_call.1} parent=11 // pred_check_branch
          %253 = sbr.rel (%p251) target = $region16
        $region15: #{tpu_custom_call.1} parent=11 // pred_region
          _
        $region16: #{tpu_custom_call.1} parent=11 // pred_fallthru
          _
        // Predicated region
        $region17: #{tpu_custom_call.1} parent=11 // pred_check
          %p254 = pneg %p121
        $region18: #{tpu_custom_call.1} parent=11 // pred_check_branch
          %256 = sbr.rel (%p254) target = $region20
        $region19: #{tpu_custom_call.1} parent=11 // pred_region
          _
        $region20: #{tpu_custom_call.1} parent=11 // pred_fallthru
          _
        // Predicated region
        $region21: #{tpu_custom_call.1} parent=11 // pred_check
          %p257 = pneg %p142
        $region22: #{tpu_custom_call.1} parent=11 // pred_check_branch
          %259 = sbr.rel (%p257) target = $region24
        $region23: #{tpu_custom_call.1} parent=11 // pred_region
          _
        $region24: #{tpu_custom_call.1} parent=11 // pred_fallthru
          _
        // Predicated region
        $region25: #{tpu_custom_call.1} parent=11 // pred_check
          %p260 = pneg %p163
        $region26: #{tpu_custom_call.1} parent=11 // pred_check_branch
          %262 = sbr.rel (%p260) target = $region28
        $region27: #{tpu_custom_call.1} parent=11 // pred_region
          _
        $region28: #{tpu_custom_call.1} parent=11 // pred_fallthru
          _
      $region12: #{tpu_custom_call.1} parent=5 // pred_fallthru
        _
      %p263 = scmp.lt.s32.totalorder %s27, 3
      // Predicated region
      $region29: #{tpu_custom_call.1} parent=5 // pred_check
        %p264 = pneg %p263
      $region30: #{tpu_custom_call.1} parent=5 // pred_check_branch
        %266 = sbr.rel (%p264) target = $region32
      $region31: #{tpu_custom_call.1} parent=5 // pred_region
        // Predicated region
        $region33: #{tpu_custom_call.1} parent=31 // pred_check
          %p267 = pneg %p47
        $region34: #{tpu_custom_call.1} parent=31 // pred_check_branch
          %269 = sbr.rel (%p267) target = $region36
        $region35: #{tpu_custom_call.1} parent=31 // pred_region
          %s270 = sand.u32 %s37, 1
          %s271 = scalar_lea.sflag [#allocation3], %s270
          %s272 = sand.u32 %s37, 1
          %s273 = smul.addr %s272, 16
          %s274 = scalar_lea.vmem [#allocation2], %s273
          %s275 = smul.u32 4, %s27
          %s277 = ssub.s32 256, 256
          %278 = vsyncadd %s271, %s277
          %s279 = smul.addr %s275, 64
          %s280 = scalar_lea.hbm %s0, %s279
          %s282 = sshll.u32 %s274, 4
          %s283 = int_to_ptr.vmem [resolvable:$true] %s282
          %285 = dma.hbm_to_vmem [thread:$0]  %s280, 256, %s283, %s271
        $region36: #{tpu_custom_call.1} parent=31 // pred_fallthru
          _
        // Predicated region
        $region37: #{tpu_custom_call.1} parent=31 // pred_check
          %p286 = pneg %p73
        $region38: #{tpu_custom_call.1} parent=31 // pred_check_branch
          %288 = sbr.rel (%p286) target = $region40
        $region39: #{tpu_custom_call.1} parent=31 // pred_region
          %s289 = sand.u32 %s63, 1
          %s290 = scalar_lea.sflag [#allocation6], %s289
          %s291 = sand.u32 %s63, 1
          %s292 = smul.addr %s291, 8
          %s293 = scalar_lea.vmem [#allocation5], %s292
          %s294 = smul.u32 4, %s27
          %s296 = ssub.s32 128, 128
          %297 = vsyncadd %s290, %s296
          %s298 = smul.addr %s294, 32
          %s299 = scalar_lea.hbm %s1, %s298
          %s301 = sshll.u32 %s293, 4
          %s302 = int_to_ptr.vmem [resolvable:$true] %s301
          %304 = dma.hbm_to_vmem [thread:$0]  %s299, 128, %s302, %s290
        $region40: #{tpu_custom_call.1} parent=31 // pred_fallthru
          _
      $region32: #{tpu_custom_call.1} parent=5 // pred_fallthru
        _
      %p305 = scmp.le.s32.totalorder 1, %s27
      %p306 = scmp.lt.s32.totalorder %s27, 4
      %p307 = pnand %p305, %p306
      %p308 = pneg %p307
      // Predicated region
      $region41: #{tpu_custom_call.1} parent=5 // pred_check
        _
      $region42: #{tpu_custom_call.1} parent=5 // pred_check_branch
        %310 = sbr.rel (%p307) target = $region44
      $region43: #{tpu_custom_call.1} parent=5 // pred_region
        %s311 = ssub.s32 %s27, 1
        %s312 = sand.u32 %s40, 1
        %s313 = scalar_lea.sflag [#allocation3], %s312
        %s314 = sand.u32 %s40, 1
        %s315 = smul.addr %s314, 16
        %s316 = scalar_lea.vmem [#allocation2], %s315
        // Predicated region
        $region45: #{tpu_custom_call.1} parent=43 // pred_check
          %p317 = pneg %p53
        $region46: #{tpu_custom_call.1} parent=43 // pred_check_branch
          %319 = sbr.rel (%p317) target = $region48
        $region47: #{tpu_custom_call.1} parent=43 // pred_region
          %320 = dma.done %s313, 256
        $region48: #{tpu_custom_call.1} parent=43 // pred_fallthru
          _
        %s321 = sand.u32 %s66, 1
        %s322 = scalar_lea.sflag [#allocation6], %s321
        %s323 = sand.u32 %s66, 1
        %s324 = smul.addr %s323, 8
        %s325 = scalar_lea.vmem [#allocation5], %s324
        // Predicated region
        $region49: #{tpu_custom_call.1} parent=43 // pred_check
          %p326 = pneg %p79
        $region50: #{tpu_custom_call.1} parent=43 // pred_check_branch
          %328 = sbr.rel (%p326) target = $region52
        $region51: #{tpu_custom_call.1} parent=43 // pred_region
          %329 = dma.done %s322, 128
        $region52: #{tpu_custom_call.1} parent=43 // pred_fallthru
          _
        %s330 = sand.u32 %s40, 1
        %s331 = scalar_lea.sflag [#allocation3], %s330
        %s332 = sand.u32 %s40, 1
        %s333 = smul.addr %s332, 16
        %s334 = scalar_lea.vmem [#allocation2], %s333
        %p335 = pneg %p53
        %p336 = pneg %p50
        %s337 = sand.u32 %s66, 1
        %s338 = scalar_lea.sflag [#allocation6], %s337
        %s339 = sand.u32 %s66, 1
        %s340 = smul.addr %s339, 8
        %s341 = scalar_lea.vmem [#allocation5], %s340
        %p342 = pneg %p79
        %p343 = pneg %p76
        %p344 = pneg %p100
        %p345 = pneg %p97
        %p346 = pneg %p121
        %p347 = pneg %p118
        %p348 = pneg %p142
        %p349 = pneg %p139
        %p350 = pneg %p163
        %p351 = pneg %p160
        %p352 = pneg %p189
        %p353 = pneg %p186
        %s354 = sand.u32 %s176, 1
        %s355 = scalar_lea.sflag [#allocation4], %s354
        %s356 = sand.u32 %s176, 1
        %s357 = smul.addr %s356, 32
        %s358 = scalar_lea.vmem [#allocation7], %s357
        %p359 = pneg %p215
        %p360 = pneg %p212
        %s361 = sand.u32 %s32, 1
        %s362 = scalar_lea.sflag [#allocation9], %s361
        %s363 = sand.u32 %s202, 1
        %s364 = smul.addr %s363, 4
        %s365 = scalar_lea.vmem [#allocation8], %s364
        %p366 = pneg %p236
        %p367 = pneg %p233
        %s368 = smul.u32 4, %s32
        %s369 = smul.u32 4, %s32
        %s370 = smul.u32 4, %s32
        %s371 = smul.u32 4, %s32
        %v372 = vld [vmem:[%s325] sm:$0xff]
        %v373 = vlaneseq
        %v374 = vshrl.u32 %v373, 7
        %v375 = vadd.s32 %v374, 8
        %v376 = vadd.s32 %v374, 16
        %v377 = vadd.s32 %v374, 24
        %v378 = vadd.s32 %v374, 32
        %v379 = vadd.s32 %v374, 40
        %v380 = vadd.s32 %v374, 48
        %v381 = vadd.s32 %v374, 56
        %v382 = vadd.s32 %v374, 64
        %v383 = vadd.s32 %v374, 72
        %v384 = vadd.s32 %v374, 80
        %v385 = vadd.s32 %v374, 88
        %v386 = vadd.s32 %v374, 96
        %v387 = vadd.s32 %v374, 104
        %v388 = vadd.s32 %v374, 112
        %v389 = vadd.s32 %v374, 120
        %v390 = vlaneseq
        %v391 = vshrl.u32 %v390, 7
        %v392 = vsub.s32 0, %v391
        %v393 = vrot.slane %v372, %v392
        %v394 = vlaneseq
        %v395 = vshrl.u32 %v394, 7
        %v396 = vsub.s32 2, %v395
        %v397 = vrot.slane %v372, %v396
        %v398 = vlaneseq
        %v399 = vshrl.u32 %v398, 7
        %v400 = vsub.s32 4, %v399
        %v401 = vrot.slane %v372, %v400
        %v402 = vlaneseq
        %v403 = vshrl.u32 %v402, 7
        %v404 = vsub.s32 6, %v403
        %v405 = vrot.slane %v372, %v404
        %v406 = vlaneseq
        %v407 = vshrl.u32 %v406, 7
        %v408 = vsub.s32 0, %v407
        %v409 = vrot.slane %v393, %v408
        %v410 = vlaneseq
        %v411 = vshrl.u32 %v410, 7
        %v412 = vsub.s32 0, %v411
        %v413 = vrot.slane %v397, %v412
        %v414 = vlaneseq
        %v415 = vshrl.u32 %v414, 7
        %v416 = vsub.s32 0, %v415
        %v417 = vrot.slane %v401, %v416
        %v418 = vlaneseq
        %v419 = vshrl.u32 %v418, 7
        %v420 = vsub.s32 0, %v419
        %v421 = vrot.slane %v405, %v420
        %vm422 = vcmp.eq.s32.totalorder %v374, %v409
        %vm423 = vcmp.eq.s32.totalorder %v374, %v413
        %vm424 = vcmp.eq.s32.totalorder %v374, %v417
        %vm425 = vcmp.eq.s32.totalorder %v374, %v421
        %vm426 = vcmp.eq.s32.totalorder %v375, %v409
        %vm427 = vcmp.eq.s32.totalorder %v375, %v413
        %vm428 = vcmp.eq.s32.totalorder %v375, %v417
        %vm429 = vcmp.eq.s32.totalorder %v375, %v421
        %vm430 = vcmp.eq.s32.totalorder %v376, %v409
        %vm431 = vcmp.eq.s32.totalorder %v376, %v413
        %vm432 = vcmp.eq.s32.totalorder %v376, %v417
        %vm433 = vcmp.eq.s32.totalorder %v376, %v421
        %vm434 = vcmp.eq.s32.totalorder %v377, %v409
        %vm435 = vcmp.eq.s32.totalorder %v377, %v413
        %vm436 = vcmp.eq.s32.totalorder %v377, %v417
        %vm437 = vcmp.eq.s32.totalorder %v377, %v421
        %vm438 = vcmp.eq.s32.totalorder %v378, %v409
        %vm439 = vcmp.eq.s32.totalorder %v378, %v413
        %vm440 = vcmp.eq.s32.totalorder %v378, %v417
        %vm441 = vcmp.eq.s32.totalorder %v378, %v421
        %vm442 = vcmp.eq.s32.totalorder %v379, %v409
        %vm443 = vcmp.eq.s32.totalorder %v379, %v413
        %vm444 = vcmp.eq.s32.totalorder %v379, %v417
        %vm445 = vcmp.eq.s32.totalorder %v379, %v421
        %vm446 = vcmp.eq.s32.totalorder %v380, %v409
        %vm447 = vcmp.eq.s32.totalorder %v380, %v413
        %vm448 = vcmp.eq.s32.totalorder %v380, %v417
        %vm449 = vcmp.eq.s32.totalorder %v380, %v421
        %vm450 = vcmp.eq.s32.totalorder %v381, %v409
        %vm451 = vcmp.eq.s32.totalorder %v381, %v413
        %vm452 = vcmp.eq.s32.totalorder %v381, %v417
        %vm453 = vcmp.eq.s32.totalorder %v381, %v421
        %vm454 = vcmp.eq.s32.totalorder %v382, %v409
        %vm455 = vcmp.eq.s32.totalorder %v382, %v413
        %vm456 = vcmp.eq.s32.totalorder %v382, %v417
        %vm457 = vcmp.eq.s32.totalorder %v382, %v421
        %vm458 = vcmp.eq.s32.totalorder %v383, %v409
        %vm459 = vcmp.eq.s32.totalorder %v383, %v413
        %vm460 = vcmp.eq.s32.totalorder %v383, %v417
        %vm461 = vcmp.eq.s32.totalorder %v383, %v421
        %vm462 = vcmp.eq.s32.totalorder %v384, %v409
        %vm463 = vcmp.eq.s32.totalorder %v384, %v413
        %vm464 = vcmp.eq.s32.totalorder %v384, %v417
        %vm465 = vcmp.eq.s32.totalorder %v384, %v421
        %vm466 = vcmp.eq.s32.totalorder %v385, %v409
        %vm467 = vcmp.eq.s32.totalorder %v385, %v413
        %vm468 = vcmp.eq.s32.totalorder %v385, %v417
        %vm469 = vcmp.eq.s32.totalorder %v385, %v421
        %vm470 = vcmp.eq.s32.totalorder %v386, %v409
        %vm471 = vcmp.eq.s32.totalorder %v386, %v413
        %vm472 = vcmp.eq.s32.totalorder %v386, %v417
        %vm473 = vcmp.eq.s32.totalorder %v386, %v421
        %vm474 = vcmp.eq.s32.totalorder %v387, %v409
        %vm475 = vcmp.eq.s32.totalorder %v387, %v413
        %vm476 = vcmp.eq.s32.totalorder %v387, %v417
        %vm477 = vcmp.eq.s32.totalorder %v387, %v421
        %vm478 = vcmp.eq.s32.totalorder %v388, %v409
        %vm479 = vcmp.eq.s32.totalorder %v388, %v413
        %vm480 = vcmp.eq.s32.totalorder %v388, %v417
        %vm481 = vcmp.eq.s32.totalorder %v388, %v421
        %vm482 = vcmp.eq.s32.totalorder %v389, %v409
        %vm483 = vcmp.eq.s32.totalorder %v389, %v413
        %vm484 = vcmp.eq.s32.totalorder %v389, %v417
        %vm485 = vcmp.eq.s32.totalorder %v389, %v421
        %v486 = vsel %vm422, 1, 0
        %v487 = vsel %vm423, 1, 0
        %v488 = vsel %vm424, 1, 0
        %v489 = vsel %vm425, 1, 0
        %v490 = vsel %vm426, 1, 0
        %v491 = vsel %vm427, 1, 0
        %v492 = vsel %vm428, 1, 0
        %v493 = vsel %vm429, 1, 0
        %v494 = vsel %vm430, 1, 0
        %v495 = vsel %vm431, 1, 0
        %v496 = vsel %vm432, 1, 0
        %v497 = vsel %vm433, 1, 0
        %v498 = vsel %vm434, 1, 0
        %v499 = vsel %vm435, 1, 0
        %v500 = vsel %vm436, 1, 0
        %v501 = vsel %vm437, 1, 0
        %v502 = vsel %vm438, 1, 0
        %v503 = vsel %vm439, 1, 0
        %v504 = vsel %vm440, 1, 0
        %v505 = vsel %vm441, 1, 0
        %v506 = vsel %vm442, 1, 0
        %v507 = vsel %vm443, 1, 0
        %v508 = vsel %vm444, 1, 0
        %v509 = vsel %vm445, 1, 0
        %v510 = vsel %vm446, 1, 0
        %v511 = vsel %vm447, 1, 0
        %v512 = vsel %vm448, 1, 0
        %v513 = vsel %vm449, 1, 0
        %v514 = vsel %vm450, 1, 0
        %v515 = vsel %vm451, 1, 0
        %v516 = vsel %vm452, 1, 0
        %v517 = vsel %vm453, 1, 0
        %v518 = vsel %vm454, 1, 0
        %v519 = vsel %vm455, 1, 0
        %v520 = vsel %vm456, 1, 0
        %v521 = vsel %vm457, 1, 0
        %v522 = vsel %vm458, 1, 0
        %v523 = vsel %vm459, 1, 0
        %v524 = vsel %vm460, 1, 0
        %v525 = vsel %vm461, 1, 0
        %v526 = vsel %vm462, 1, 0
        %v527 = vsel %vm463, 1, 0
        %v528 = vsel %vm464, 1, 0
        %v529 = vsel %vm465, 1, 0
        %v530 = vsel %vm466, 1, 0
        %v531 = vsel %vm467, 1, 0
        %v532 = vsel %vm468, 1, 0
        %v533 = vsel %vm469, 1, 0
        %v534 = vsel %vm470, 1, 0
        %v535 = vsel %vm471, 1, 0
        %v536 = vsel %vm472, 1, 0
        %v537 = vsel %vm473, 1, 0
        %v538 = vsel %vm474, 1, 0
        %v539 = vsel %vm475, 1, 0
        %v540 = vsel %vm476, 1, 0
        %v541 = vsel %vm477, 1, 0
        %v542 = vsel %vm478, 1, 0
        %v543 = vsel %vm479, 1, 0
        %v544 = vsel %vm480, 1, 0
        %v545 = vsel %vm481, 1, 0
        %v546 = vsel %vm482, 1, 0
        %v547 = vsel %vm483, 1, 0
        %v548 = vsel %vm484, 1, 0
        %v549 = vsel %vm485, 1, 0
        %v550 = vcvt.s32.f32 %v486
        %v551 = vcvt.s32.f32 %v487
        %v552 = vcvt.s32.f32 %v488
        %v553 = vcvt.s32.f32 %v489
        %v554 = vcvt.s32.f32 %v490
        %v555 = vcvt.s32.f32 %v491
        %v556 = vcvt.s32.f32 %v492
        %v557 = vcvt.s32.f32 %v493
        %v558 = vcvt.s32.f32 %v494
        %v559 = vcvt.s32.f32 %v495
        %v560 = vcvt.s32.f32 %v496
        %v561 = vcvt.s32.f32 %v497
        %v562 = vcvt.s32.f32 %v498
        %v563 = vcvt.s32.f32 %v499
        %v564 = vcvt.s32.f32 %v500
        %v565 = vcvt.s32.f32 %v501
        %v566 = vcvt.s32.f32 %v502
        %v567 = vcvt.s32.f32 %v503
        %v568 = vcvt.s32.f32 %v504
        %v569 = vcvt.s32.f32 %v505
        %v570 = vcvt.s32.f32 %v506
        %v571 = vcvt.s32.f32 %v507
        %v572 = vcvt.s32.f32 %v508
        %v573 = vcvt.s32.f32 %v509
        %v574 = vcvt.s32.f32 %v510
        %v575 = vcvt.s32.f32 %v511
        %v576 = vcvt.s32.f32 %v512
        %v577 = vcvt.s32.f32 %v513
        %v578 = vcvt.s32.f32 %v514
        %v579 = vcvt.s32.f32 %v515
        %v580 = vcvt.s32.f32 %v516
        %v581 = vcvt.s32.f32 %v517
        %v582 = vcvt.s32.f32 %v518
        %v583 = vcvt.s32.f32 %v519
        %v584 = vcvt.s32.f32 %v520
        %v585 = vcvt.s32.f32 %v521
        %v586 = vcvt.s32.f32 %v522
        %v587 = vcvt.s32.f32 %v523
        %v588 = vcvt.s32.f32 %v524
        %v589 = vcvt.s32.f32 %v525
        %v590 = vcvt.s32.f32 %v526
        %v591 = vcvt.s32.f32 %v527
        %v592 = vcvt.s32.f32 %v528
        %v593 = vcvt.s32.f32 %v529
        %v594 = vcvt.s32.f32 %v530
        %v595 = vcvt.s32.f32 %v531
        %v596 = vcvt.s32.f32 %v532
        %v597 = vcvt.s32.f32 %v533
        %v598 = vcvt.s32.f32 %v534
        %v599 = vcvt.s32.f32 %v535
        %v600 = vcvt.s32.f32 %v536
        %v601 = vcvt.s32.f32 %v537
        %v602 = vcvt.s32.f32 %v538
        %v603 = vcvt.s32.f32 %v539
        %v604 = vcvt.s32.f32 %v540
        %v605 = vcvt.s32.f32 %v541
        %v606 = vcvt.s32.f32 %v542
        %v607 = vcvt.s32.f32 %v543
        %v608 = vcvt.s32.f32 %v544
        %v609 = vcvt.s32.f32 %v545
        %v610 = vcvt.s32.f32 %v546
        %v611 = vcvt.s32.f32 %v547
        %v612 = vcvt.s32.f32 %v548
        %v613 = vcvt.s32.f32 %v549
        %v614 = vlaneseq
        %v615 = vshrl.u32 %v614, 7
        %v616 = vsub.s32 1, %v615
        %v617 = vrot.slane %v372, %v616
        %v618 = vlaneseq
        %v619 = vshrl.u32 %v618, 7
        %v620 = vsub.s32 3, %v619
        %v621 = vrot.slane %v372, %v620
        %v622 = vlaneseq
        %v623 = vshrl.u32 %v622, 7
        %v624 = vsub.s32 5, %v623
        %v625 = vrot.slane %v372, %v624
        %v626 = vlaneseq
        %v627 = vshrl.u32 %v626, 7
        %v628 = vsub.s32 7, %v627
        %v629 = vrot.slane %v372, %v628
        %v630 = vlaneseq
        %v631 = vshrl.u32 %v630, 7
        %v632 = vsub.s32 1, %v631
        %v633 = vrot.slane %v617, %v632
        %v634 = vlaneseq
        %v635 = vshrl.u32 %v634, 7
        %v636 = vsub.s32 1, %v635
        %v637 = vrot.slane %v621, %v636
        %v638 = vlaneseq
        %v639 = vshrl.u32 %v638, 7
        %v640 = vsub.s32 1, %v639
        %v641 = vrot.slane %v625, %v640
        %v642 = vlaneseq
        %v643 = vshrl.u32 %v642, 7
        %v644 = vsub.s32 1, %v643
        %v645 = vrot.slane %v629, %v644
        %vm646 = vcmp.eq.s32.totalorder %v374, %v633
        %vm647 = vcmp.eq.s32.totalorder %v374, %v637
        %vm648 = vcmp.eq.s32.totalorder %v374, %v641
        %vm649 = vcmp.eq.s32.totalorder %v374, %v645
        %vm650 = vcmp.eq.s32.totalorder %v375, %v633
        %vm651 = vcmp.eq.s32.totalorder %v375, %v637
        %vm652 = vcmp.eq.s32.totalorder %v375, %v641
        %vm653 = vcmp.eq.s32.totalorder %v375, %v645
        %vm654 = vcmp.eq.s32.totalorder %v376, %v633
        %vm655 = vcmp.eq.s32.totalorder %v376, %v637
        %vm656 = vcmp.eq.s32.totalorder %v376, %v641
        %vm657 = vcmp.eq.s32.totalorder %v376, %v645
        %vm658 = vcmp.eq.s32.totalorder %v377, %v633
        %vm659 = vcmp.eq.s32.totalorder %v377, %v637
        %vm660 = vcmp.eq.s32.totalorder %v377, %v641
        %vm661 = vcmp.eq.s32.totalorder %v377, %v645
        %vm662 = vcmp.eq.s32.totalorder %v378, %v633
        %vm663 = vcmp.eq.s32.totalorder %v378, %v637
        %vm664 = vcmp.eq.s32.totalorder %v378, %v641
        %vm665 = vcmp.eq.s32.totalorder %v378, %v645
        %vm666 = vcmp.eq.s32.totalorder %v379, %v633
        %vm667 = vcmp.eq.s32.totalorder %v379, %v637
        %vm668 = vcmp.eq.s32.totalorder %v379, %v641
        %vm669 = vcmp.eq.s32.totalorder %v379, %v645
        %vm670 = vcmp.eq.s32.totalorder %v380, %v633
        %vm671 = vcmp.eq.s32.totalorder %v380, %v637
        %vm672 = vcmp.eq.s32.totalorder %v380, %v641
        %vm673 = vcmp.eq.s32.totalorder %v380, %v645
        %vm674 = vcmp.eq.s32.totalorder %v381, %v633
        %vm675 = vcmp.eq.s32.totalorder %v381, %v637
        %vm676 = vcmp.eq.s32.totalorder %v381, %v641
        %vm677 = vcmp.eq.s32.totalorder %v381, %v645
        %vm678 = vcmp.eq.s32.totalorder %v382, %v633
        %vm679 = vcmp.eq.s32.totalorder %v382, %v637
        %vm680 = vcmp.eq.s32.totalorder %v382, %v641
        %vm681 = vcmp.eq.s32.totalorder %v382, %v645
        %vm682 = vcmp.eq.s32.totalorder %v383, %v633
        %vm683 = vcmp.eq.s32.totalorder %v383, %v637
        %vm684 = vcmp.eq.s32.totalorder %v383, %v641
        %vm685 = vcmp.eq.s32.totalorder %v383, %v645
        %vm686 = vcmp.eq.s32.totalorder %v384, %v633
        %vm687 = vcmp.eq.s32.totalorder %v384, %v637
        %vm688 = vcmp.eq.s32.totalorder %v384, %v641
        %vm689 = vcmp.eq.s32.totalorder %v384, %v645
        %vm690 = vcmp.eq.s32.totalorder %v385, %v633
        %vm691 = vcmp.eq.s32.totalorder %v385, %v637
        %vm692 = vcmp.eq.s32.totalorder %v385, %v641
        %vm693 = vcmp.eq.s32.totalorder %v385, %v645
        %vm694 = vcmp.eq.s32.totalorder %v386, %v633
        %vm695 = vcmp.eq.s32.totalorder %v386, %v637
        %vm696 = vcmp.eq.s32.totalorder %v386, %v641
        %vm697 = vcmp.eq.s32.totalorder %v386, %v645
        %vm698 = vcmp.eq.s32.totalorder %v387, %v633
        %vm699 = vcmp.eq.s32.totalorder %v387, %v637
        %vm700 = vcmp.eq.s32.totalorder %v387, %v641
        %vm701 = vcmp.eq.s32.totalorder %v387, %v645
        %vm702 = vcmp.eq.s32.totalorder %v388, %v633
        %vm703 = vcmp.eq.s32.totalorder %v388, %v637
        %vm704 = vcmp.eq.s32.totalorder %v388, %v641
        %vm705 = vcmp.eq.s32.totalorder %v388, %v645
        %vm706 = vcmp.eq.s32.totalorder %v389, %v633
        %vm707 = vcmp.eq.s32.totalorder %v389, %v637
        %vm708 = vcmp.eq.s32.totalorder %v389, %v641
        %vm709 = vcmp.eq.s32.totalorder %v389, %v645
        %v710 = vsel %vm646, 1, 0
        %v711 = vsel %vm647, 1, 0
        %v712 = vsel %vm648, 1, 0
        %v713 = vsel %vm649, 1, 0
        %v714 = vsel %vm650, 1, 0
        %v715 = vsel %vm651, 1, 0
        %v716 = vsel %vm652, 1, 0
        %v717 = vsel %vm653, 1, 0
        %v718 = vsel %vm654, 1, 0
        %v719 = vsel %vm655, 1, 0
        %v720 = vsel %vm656, 1, 0
        %v721 = vsel %vm657, 1, 0
        %v722 = vsel %vm658, 1, 0
        %v723 = vsel %vm659, 1, 0
        %v724 = vsel %vm660, 1, 0
        %v725 = vsel %vm661, 1, 0
        %v726 = vsel %vm662, 1, 0
        %v727 = vsel %vm663, 1, 0
        %v728 = vsel %vm664, 1, 0
        %v729 = vsel %vm665, 1, 0
        %v730 = vsel %vm666, 1, 0
        %v731 = vsel %vm667, 1, 0
        %v732 = vsel %vm668, 1, 0
        %v733 = vsel %vm669, 1, 0
        %v734 = vsel %vm670, 1, 0
        %v735 = vsel %vm671, 1, 0
        %v736 = vsel %vm672, 1, 0
        %v737 = vsel %vm673, 1, 0
        %v738 = vsel %vm674, 1, 0
        %v739 = vsel %vm675, 1, 0
        %v740 = vsel %vm676, 1, 0
        %v741 = vsel %vm677, 1, 0
        %v742 = vsel %vm678, 1, 0
        %v743 = vsel %vm679, 1, 0
        %v744 = vsel %vm680, 1, 0
        %v745 = vsel %vm681, 1, 0
        %v746 = vsel %vm682, 1, 0
        %v747 = vsel %vm683, 1, 0
        %v748 = vsel %vm684, 1, 0
        %v749 = vsel %vm685, 1, 0
        %v750 = vsel %vm686, 1, 0
        %v751 = vsel %vm687, 1, 0
        %v752 = vsel %vm688, 1, 0
        %v753 = vsel %vm689, 1, 0
        %v754 = vsel %vm690, 1, 0
        %v755 = vsel %vm691, 1, 0
        %v756 = vsel %vm692, 1, 0
        %v757 = vsel %vm693, 1, 0
        %v758 = vsel %vm694, 1, 0
        %v759 = vsel %vm695, 1, 0
        %v760 = vsel %vm696, 1, 0
        %v761 = vsel %vm697, 1, 0
        %v762 = vsel %vm698, 1, 0
        %v763 = vsel %vm699, 1, 0
        %v764 = vsel %vm700, 1, 0
        %v765 = vsel %vm701, 1, 0
        %v766 = vsel %vm702, 1, 0
        %v767 = vsel %vm703, 1, 0
        %v768 = vsel %vm704, 1, 0
        %v769 = vsel %vm705, 1, 0
        %v770 = vsel %vm706, 1, 0
        %v771 = vsel %vm707, 1, 0
        %v772 = vsel %vm708, 1, 0
        %v773 = vsel %vm709, 1, 0
        %v774 = vcvt.s32.f32 %v710
        %v775 = vcvt.s32.f32 %v711
        %v776 = vcvt.s32.f32 %v712
        %v777 = vcvt.s32.f32 %v713
        %v778 = vcvt.s32.f32 %v714
        %v779 = vcvt.s32.f32 %v715
        %v780 = vcvt.s32.f32 %v716
        %v781 = vcvt.s32.f32 %v717
        %v782 = vcvt.s32.f32 %v718
        %v783 = vcvt.s32.f32 %v719
        %v784 = vcvt.s32.f32 %v720
        %v785 = vcvt.s32.f32 %v721
        %v786 = vcvt.s32.f32 %v722
        %v787 = vcvt.s32.f32 %v723
        %v788 = vcvt.s32.f32 %v724
        %v789 = vcvt.s32.f32 %v725
        %v790 = vcvt.s32.f32 %v726
        %v791 = vcvt.s32.f32 %v727
        %v792 = vcvt.s32.f32 %v728
        %v793 = vcvt.s32.f32 %v729
        %v794 = vcvt.s32.f32 %v730
        %v795 = vcvt.s32.f32 %v731
        %v796 = vcvt.s32.f32 %v732
        %v797 = vcvt.s32.f32 %v733
        %v798 = vcvt.s32.f32 %v734
        %v799 = vcvt.s32.f32 %v735
        %v800 = vcvt.s32.f32 %v736
        %v801 = vcvt.s32.f32 %v737
        %v802 = vcvt.s32.f32 %v738
        %v803 = vcvt.s32.f32 %v739
        %v804 = vcvt.s32.f32 %v740
        %v805 = vcvt.s32.f32 %v741
        %v806 = vcvt.s32.f32 %v742
        %v807 = vcvt.s32.f32 %v743
        %v808 = vcvt.s32.f32 %v744
        %v809 = vcvt.s32.f32 %v745
        %v810 = vcvt.s32.f32 %v746
        %v811 = vcvt.s32.f32 %v747
        %v812 = vcvt.s32.f32 %v748
        %v813 = vcvt.s32.f32 %v749
        %v814 = vcvt.s32.f32 %v750
        %v815 = vcvt.s32.f32 %v751
        %v816 = vcvt.s32.f32 %v752
        %v817 = vcvt.s32.f32 %v753
        %v818 = vcvt.s32.f32 %v754
        %v819 = vcvt.s32.f32 %v755
        %v820 = vcvt.s32.f32 %v756
        %v821 = vcvt.s32.f32 %v757
        %v822 = vcvt.s32.f32 %v758
        %v823 = vcvt.s32.f32 %v759
        %v824 = vcvt.s32.f32 %v760
        %v825 = vcvt.s32.f32 %v761
        %v826 = vcvt.s32.f32 %v762
        %v827 = vcvt.s32.f32 %v763
        %v828 = vcvt.s32.f32 %v764
        %v829 = vcvt.s32.f32 %v765
        %v830 = vcvt.s32.f32 %v766
        %v831 = vcvt.s32.f32 %v767
        %v832 = vcvt.s32.f32 %v768
        %v833 = vcvt.s32.f32 %v769
        %v834 = vcvt.s32.f32 %v770
        %v835 = vcvt.s32.f32 %v771
        %v836 = vcvt.s32.f32 %v772
        %v837 = vcvt.s32.f32 %v773
        %v838 = vld [vmem:[%s2] sm:$0xff]
        %v839 = vld [vmem:[%s3] sm:$0xff]
        %840 = vmatprep.subr.mxu0 %v835
        %841 = vmatpush1.msra.mxu0 %v834
        %842 = vmatprep.subr.mxu0 %v831
        %843 = vmatpush1.msra.mxu0 %v830
        %844 = vmatprep.subr.mxu0 %v827
        %845 = vmatpush1.msra.mxu0 %v826
        %846 = vmatprep.subr.mxu0 %v823
        %847 = vmatpush1.msra.mxu0 %v822
        %848 = vmatprep.subr.mxu0 %v819
        %849 = vmatpush1.msra.mxu0 %v818
        %850 = vmatprep.subr.mxu0 %v815
        %851 = vmatpush1.msra.mxu0 %v814
        %852 = vmatprep.subr.mxu0 %v811
        %853 = vmatpush1.msra.mxu0 %v810
        %854 = vmatprep.subr.mxu0 %v807
        %855 = vmatpush1.msra.mxu0 %v806
        %856 = vmatprep.subr.mxu0 %v803
        %857 = vmatpush1.msra.mxu0 %v802
        %858 = vmatprep.subr.mxu0 %v799
        %859 = vmatpush1.msra.mxu0 %v798
        %860 = vmatprep.subr.mxu0 %v795
        %861 = vmatpush1.msra.mxu0 %v794
        %862 = vmatprep.subr.mxu0 %v791
        %863 = vmatpush1.msra.mxu0 %v790
        %864 = vmatprep.subr.mxu0 %v787
        %865 = vmatpush1.msra.mxu0 %v786
        %866 = vmatprep.subr.mxu0 %v783
        %867 = vmatpush1.msra.mxu0 %v782
        %868 = vmatprep.subr.mxu0 %v779
        %869 = vmatpush1.msra.mxu0 %v778
        %870 = vmatprep.subr.mxu0 %v775
        %871 = vmatpush1.msra.mxu0 %v774
        %872 = vmatprep.subr.mxu0 0.0
        %873 = vmatpush2.msra.mxu0 0.0
        %874 = vmatprep.subr.mxu0 0.0
        %875 = vmatpush2.msra.mxu0 0.0
        %876 = vmatprep.subr.mxu0 0.0
        %877 = vmatpush2.msra.mxu0 0.0
        %878 = vmatprep.subr.mxu0 0.0
        %879 = vmatpush2.msra.mxu0 0.0
        %880 = vmatprep.subr.mxu0 0.0
        %881 = vmatpush2.msra.mxu0 0.0
        %882 = vmatprep.subr.mxu0 0.0
        %883 = vmatpush2.msra.mxu0 0.0
        %884 = vmatprep.subr.mxu0 0.0
        %885 = vmatpush2.msra.mxu0 0.0
        %886 = vmatprep.subr.mxu0 0.0
        %887 = vmatpush2.msra.mxu0 0.0
        %888 = vmatprep.subr.mxu0 0.0
        %889 = vmatpush2.msra.mxu0 0.0
        %890 = vmatprep.subr.mxu0 0.0
        %891 = vmatpush2.msra.mxu0 0.0
        %892 = vmatprep.subr.mxu0 0.0
        %893 = vmatpush2.msra.mxu0 0.0
        %894 = vmatprep.subr.mxu0 0.0
        %895 = vmatpush2.msra.mxu0 0.0
        %896 = vmatprep.subr.mxu0 0.0
        %897 = vmatpush2.msra.mxu0 0.0
        %898 = vmatprep.subr.mxu0 0.0
        %899 = vmatpush2.msra.mxu0 0.0
        %900 = vmatprep.subr.mxu0 0.0
        %901 = vmatpush2.msra.mxu0 0.0
        %902 = vmatprep.subr.mxu0 0.0
        %903 = vmatpush2.msra.mxu0 0.0
        %904 = vmatprep.mubr.f32.mxu0 0.0
        %905 = vmatmul.mubr.f32.gmra.mxu0 %v839
        %v906 = vpop.f32.mrf.mxu0
        %v907 = vadd.f32 0.0, %v906
        %v908 = vpop.f32.mrf.mxu0
        %v909 = vadd.f32 0.0, %v908
        %910 = vdwg.mxu0
        %911 = vmatprep.subr.mxu0 %v837
        %912 = vmatpush1.msra.mxu0 %v836
        %913 = vmatprep.subr.mxu0 %v833
        %914 = vmatpush1.msra.mxu0 %v832
        %915 = vmatprep.subr.mxu0 %v829
        %916 = vmatpush1.msra.mxu0 %v828
        %917 = vmatprep.subr.mxu0 %v825
        %918 = vmatpush1.msra.mxu0 %v824
        %919 = vmatprep.subr.mxu0 %v821
        %920 = vmatpush1.msra.mxu0 %v820
        %921 = vmatprep.subr.mxu0 %v817
        %922 = vmatpush1.msra.mxu0 %v816
        %923 = vmatprep.subr.mxu0 %v813
        %924 = vmatpush1.msra.mxu0 %v812
        %925 = vmatprep.subr.mxu0 %v809
        %926 = vmatpush1.msra.mxu0 %v808
        %927 = vmatprep.subr.mxu0 %v805
        %928 = vmatpush1.msra.mxu0 %v804
        %929 = vmatprep.subr.mxu0 %v801
        %930 = vmatpush1.msra.mxu0 %v800
        %931 = vmatprep.subr.mxu0 %v797
        %932 = vmatpush1.msra.mxu0 %v796
        %933 = vmatprep.subr.mxu0 %v793
        %934 = vmatpush1.msra.mxu0 %v792
        %935 = vmatprep.subr.mxu0 %v789
        %936 = vmatpush1.msra.mxu0 %v788
        %937 = vmatprep.subr.mxu0 %v785
        %938 = vmatpush1.msra.mxu0 %v784
        %939 = vmatprep.subr.mxu0 %v781
        %940 = vmatpush1.msra.mxu0 %v780
        %941 = vmatprep.subr.mxu0 %v777
        %942 = vmatpush1.msra.mxu0 %v776
        %943 = vmatprep.subr.mxu0 0.0
        %944 = vmatpush2.msra.mxu0 0.0
        %945 = vmatprep.subr.mxu0 0.0
        %946 = vmatpush2.msra.mxu0 0.0
        %947 = vmatprep.subr.mxu0 0.0
        %948 = vmatpush2.msra.mxu0 0.0
        %949 = vmatprep.subr.mxu0 0.0
        %950 = vmatpush2.msra.mxu0 0.0
        %951 = vmatprep.subr.mxu0 0.0
        %952 = vmatpush2.msra.mxu0 0.0
        %953 = vmatprep.subr.mxu0 0.0
        %954 = vmatpush2.msra.mxu0 0.0
        %955 = vmatprep.subr.mxu0 0.0
        %956 = vmatpush2.msra.mxu0 0.0
        %957 = vmatprep.subr.mxu0 0.0
        %958 = vmatpush2.msra.mxu0 0.0
        %959 = vmatprep.subr.mxu0 0.0
        %960 = vmatpush2.msra.mxu0 0.0
        %961 = vmatprep.subr.mxu0 0.0
        %962 = vmatpush2.msra.mxu0 0.0
        %963 = vmatprep.subr.mxu0 0.0
        %964 = vmatpush2.msra.mxu0 0.0
        %965 = vmatprep.subr.mxu0 0.0
        %966 = vmatpush2.msra.mxu0 0.0
        %967 = vmatprep.subr.mxu0 0.0
        %968 = vmatpush2.msra.mxu0 0.0
        %969 = vmatprep.subr.mxu0 0.0
        %970 = vmatpush2.msra.mxu0 0.0
        %971 = vmatprep.subr.mxu0 0.0
        %972 = vmatpush2.msra.mxu0 0.0
        %973 = vmatprep.subr.mxu0 0.0
        %974 = vmatpush2.msra.mxu0 0.0
        %975 = vmatprep.mubr.f32.mxu0 0.0
        %976 = vmatmul.mubr.f32.gmra.mxu0 %v839
        %v977 = vpop.f32.mrf.mxu0
        %v978 = vadd.f32 0.0, %v977
        %v979 = vpop.f32.mrf.mxu0
        %v980 = vadd.f32 0.0, %v979
        %981 = vdwg.mxu0
        %982 = vmatprep.subr.mxu0 %v611
        %983 = vmatpush1.msra.mxu0 %v610
        %984 = vmatprep.subr.mxu0 %v607
        %985 = vmatpush1.msra.mxu0 %v606
        %986 = vmatprep.subr.mxu0 %v603
        %987 = vmatpush1.msra.mxu0 %v602
        %988 = vmatprep.subr.mxu0 %v599
        %989 = vmatpush1.msra.mxu0 %v598
        %990 = vmatprep.subr.mxu0 %v595
        %991 = vmatpush1.msra.mxu0 %v594
        %992 = vmatprep.subr.mxu0 %v591
        %993 = vmatpush1.msra.mxu0 %v590
        %994 = vmatprep.subr.mxu0 %v587
        %995 = vmatpush1.msra.mxu0 %v586
        %996 = vmatprep.subr.mxu0 %v583
        %997 = vmatpush1.msra.mxu0 %v582
        %998 = vmatprep.subr.mxu0 %v579
        %999 = vmatpush1.msra.mxu0 %v578
        %1000 = vmatprep.subr.mxu0 %v575
        %1001 = vmatpush1.msra.mxu0 %v574
        %1002 = vmatprep.subr.mxu0 %v571
        %1003 = vmatpush1.msra.mxu0 %v570
        %1004 = vmatprep.subr.mxu0 %v567
        %1005 = vmatpush1.msra.mxu0 %v566
        %1006 = vmatprep.subr.mxu0 %v563
        %1007 = vmatpush1.msra.mxu0 %v562
        %1008 = vmatprep.subr.mxu0 %v559
        %1009 = vmatpush1.msra.mxu0 %v558
        %1010 = vmatprep.subr.mxu0 %v555
        %1011 = vmatpush1.msra.mxu0 %v554
        %1012 = vmatprep.subr.mxu0 %v551
        %1013 = vmatpush1.msra.mxu0 %v550
        %1014 = vmatprep.subr.mxu0 0.0
        %1015 = vmatpush2.msra.mxu0 0.0
        %1016 = vmatprep.subr.mxu0 0.0
        %1017 = vmatpush2.msra.mxu0 0.0
        %1018 = vmatprep.subr.mxu0 0.0
        %1019 = vmatpush2.msra.mxu0 0.0
        %1020 = vmatprep.subr.mxu0 0.0
        %1021 = vmatpush2.msra.mxu0 0.0
        %1022 = vmatprep.subr.mxu0 0.0
        %1023 = vmatpush2.msra.mxu0 0.0
        %1024 = vmatprep.subr.mxu0 0.0
        %1025 = vmatpush2.msra.mxu0 0.0
        %1026 = vmatprep.subr.mxu0 0.0
        %1027 = vmatpush2.msra.mxu0 0.0
        %1028 = vmatprep.subr.mxu0 0.0
        %1029 = vmatpush2.msra.mxu0 0.0
        %1030 = vmatprep.subr.mxu0 0.0
        %1031 = vmatpush2.msra.mxu0 0.0
        %1032 = vmatprep.subr.mxu0 0.0
        %1033 = vmatpush2.msra.mxu0 0.0
        %1034 = vmatprep.subr.mxu0 0.0
        %1035 = vmatpush2.msra.mxu0 0.0
        %1036 = vmatprep.subr.mxu0 0.0
        %1037 = vmatpush2.msra.mxu0 0.0
        %1038 = vmatprep.subr.mxu0 0.0
        %1039 = vmatpush2.msra.mxu0 0.0
        %1040 = vmatprep.subr.mxu0 0.0
        %1041 = vmatpush2.msra.mxu0 0.0
        %1042 = vmatprep.subr.mxu0 0.0
        %1043 = vmatpush2.msra.mxu0 0.0
        %1044 = vmatprep.subr.mxu0 0.0
        %1045 = vmatpush2.msra.mxu0 0.0
        %1046 = vmatprep.mubr.f32.mxu0 0.0
        %1047 = vmatmul.mubr.f32.gmra.mxu0 %v838
        %v1048 = vpop.f32.mrf.mxu0
        %v1049 = vadd.f32 %v907, %v1048
        %v1050 = vpop.f32.mrf.mxu0
        %v1051 = vadd.f32 %v909, %v1050
        %1052 = vdwg.mxu0
        %1053 = vmatprep.subr.mxu0 %v613
        %1054 = vmatpush1.msra.mxu0 %v612
        %1055 = vmatprep.subr.mxu0 %v609
        %1056 = vmatpush1.msra.mxu0 %v608
        %1057 = vmatprep.subr.mxu0 %v605
        %1058 = vmatpush1.msra.mxu0 %v604
        %1059 = vmatprep.subr.mxu0 %v601
        %1060 = vmatpush1.msra.mxu0 %v600
        %1061 = vmatprep.subr.mxu0 %v597
        %1062 = vmatpush1.msra.mxu0 %v596
        %1063 = vmatprep.subr.mxu0 %v593
        %1064 = vmatpush1.msra.mxu0 %v592
        %1065 = vmatprep.subr.mxu0 %v589
        %1066 = vmatpush1.msra.mxu0 %v588
        %1067 = vmatprep.subr.mxu0 %v585
        %1068 = vmatpush1.msra.mxu0 %v584
        %1069 = vmatprep.subr.mxu0 %v581
        %1070 = vmatpush1.msra.mxu0 %v580
        %1071 = vmatprep.subr.mxu0 %v577
        %1072 = vmatpush1.msra.mxu0 %v576
        %1073 = vmatprep.subr.mxu0 %v573
        %1074 = vmatpush1.msra.mxu0 %v572
        %1075 = vmatprep.subr.mxu0 %v569
        %1076 = vmatpush1.msra.mxu0 %v568
        %1077 = vmatprep.subr.mxu0 %v565
        %1078 = vmatpush1.msra.mxu0 %v564
        %1079 = vmatprep.subr.mxu0 %v561
        %1080 = vmatpush1.msra.mxu0 %v560
        %1081 = vmatprep.subr.mxu0 %v557
        %1082 = vmatpush1.msra.mxu0 %v556
        %1083 = vmatprep.subr.mxu0 %v553
        %1084 = vmatpush1.msra.mxu0 %v552
        %1085 = vmatprep.subr.mxu0 0.0
        %1086 = vmatpush2.msra.mxu0 0.0
        %1087 = vmatprep.subr.mxu0 0.0
        %1088 = vmatpush2.msra.mxu0 0.0
        %1089 = vmatprep.subr.mxu0 0.0
        %1090 = vmatpush2.msra.mxu0 0.0
        %1091 = vmatprep.subr.mxu0 0.0
        %1092 = vmatpush2.msra.mxu0 0.0
        %1093 = vmatprep.subr.mxu0 0.0
        %1094 = vmatpush2.msra.mxu0 0.0
        %1095 = vmatprep.subr.mxu0 0.0
        %1096 = vmatpush2.msra.mxu0 0.0
        %1097 = vmatprep.subr.mxu0 0.0
        %1098 = vmatpush2.msra.mxu0 0.0
        %1099 = vmatprep.subr.mxu0 0.0
        %1100 = vmatpush2.msra.mxu0 0.0
        %1101 = vmatprep.subr.mxu0 0.0
        %1102 = vmatpush2.msra.mxu0 0.0
        %1103 = vmatprep.subr.mxu0 0.0
        %1104 = vmatpush2.msra.mxu0 0.0
        %1105 = vmatprep.subr.mxu0 0.0
        %1106 = vmatpush2.msra.mxu0 0.0
        %1107 = vmatprep.subr.mxu0 0.0
        %1108 = vmatpush2.msra.mxu0 0.0
        %1109 = vmatprep.subr.mxu0 0.0
        %1110 = vmatpush2.msra.mxu0 0.0
        %1111 = vmatprep.subr.mxu0 0.0
        %1112 = vmatpush2.msra.mxu0 0.0
        %1113 = vmatprep.subr.mxu0 0.0
        %1114 = vmatpush2.msra.mxu0 0.0
        %1115 = vmatprep.subr.mxu0 0.0
        %1116 = vmatpush2.msra.mxu0 0.0
        %1117 = vmatprep.mubr.f32.mxu0 0.0
        %1118 = vmatmul.mubr.f32.gmra.mxu0 %v838
        %v1119 = vpop.f32.mrf.mxu0
        %v1120 = vadd.f32 %v978, %v1119
        %v1121 = vpop.f32.mrf.mxu0
        %v1122 = vadd.f32 %v980, %v1121
        %1123 = vdwg.mxu0
        %v1124 = vld [vmem:[%s4] sm:$0xff]
        %v1125 = vld [vmem:[%s316] sm:$0xff]
        %v1126 = vld [vmem:[%s316 + $0x8] sm:$0xff]
        %v1129 = vcombine.high %v1125, %v1125
        %v1130 = vcombine.high %v1126, %v1126
        %vm1131 = vcmask 31744
        %v1133 = vsel %vm1131, %v1124, 0
        %vm1135 = vcmask 1043456
        %v1136 = vsel %vm1135, %v1125, 0
        %v1138 = vsel %vm1135, %v1129, 0
        %v1140 = vsel %vm1135, %v1126, 0
        %v1142 = vsel %vm1135, %v1130, 0
        %1144 = vmatprep.subr.mxu0 0.0
        %1145 = vmatpush1.msra.mxu0 0.0
        %1146 = vmatprep.subr.mxu0 0.0
        %1147 = vmatpush1.msra.mxu0 0.0
        %1148 = vmatprep.subr.mxu0 0.0
        %1149 = vmatpush1.msra.mxu0 0.0
        %1150 = vmatprep.subr.mxu0 0.0
        %1151 = vmatpush1.msra.mxu0 0.0
        %1152 = vmatprep.subr.mxu0 0.0
        %1153 = vmatpush1.msra.mxu0 0.0
        %1154 = vmatprep.subr.mxu0 0.0
        %1155 = vmatpush1.msra.mxu0 0.0
        %1156 = vmatprep.subr.mxu0 0.0
        %1157 = vmatpush1.msra.mxu0 0.0
        %1158 = vmatprep.subr.mxu0 0.0
        %1159 = vmatpush1.msra.mxu0 0.0
        %1160 = vmatprep.subr.mxu0 0.0
        %1161 = vmatpush1.msra.mxu0 0.0
        %1162 = vmatprep.subr.mxu0 0.0
        %1163 = vmatpush1.msra.mxu0 0.0
        %1164 = vmatprep.subr.mxu0 0.0
        %1165 = vmatpush1.msra.mxu0 0.0
        %1166 = vmatprep.subr.mxu0 0.0
        %1167 = vmatpush1.msra.mxu0 0.0
        %1168 = vmatprep.subr.mxu0 0.0
        %1169 = vmatpush1.msra.mxu0 0.0
        %1170 = vmatprep.subr.mxu0 0.0
        %1171 = vmatpush1.msra.mxu0 0.0
        %1172 = vmatprep.subr.mxu0 0.0
        %1173 = vmatpush1.msra.mxu0 0.0
        %1174 = vmatprep.subr.mxu0 %v1138
        %1175 = vmatpush1.msra.mxu0 %v1136
        %1176 = vmatprep.subr.mxu0 0.0
        %1177 = vmatpush2.msra.mxu0 0.0
        %1178 = vmatprep.subr.mxu0 0.0
        %1179 = vmatpush2.msra.mxu0 0.0
        %1180 = vmatprep.subr.mxu0 0.0
        %1181 = vmatpush2.msra.mxu0 0.0
        %1182 = vmatprep.subr.mxu0 0.0
        %1183 = vmatpush2.msra.mxu0 0.0
        %1184 = vmatprep.subr.mxu0 0.0
        %1185 = vmatpush2.msra.mxu0 0.0
        %1186 = vmatprep.subr.mxu0 0.0
        %1187 = vmatpush2.msra.mxu0 0.0
        %1188 = vmatprep.subr.mxu0 0.0
        %1189 = vmatpush2.msra.mxu0 0.0
        %1190 = vmatprep.subr.mxu0 0.0
        %1191 = vmatpush2.msra.mxu0 0.0
        %1192 = vmatprep.subr.mxu0 0.0
        %1193 = vmatpush2.msra.mxu0 0.0
        %1194 = vmatprep.subr.mxu0 0.0
        %1195 = vmatpush2.msra.mxu0 0.0
        %1196 = vmatprep.subr.mxu0 0.0
        %1197 = vmatpush2.msra.mxu0 0.0
        %1198 = vmatprep.subr.mxu0 0.0
        %1199 = vmatpush2.msra.mxu0 0.0
        %1200 = vmatprep.subr.mxu0 0.0
        %1201 = vmatpush2.msra.mxu0 0.0
        %1202 = vmatprep.subr.mxu0 0.0
        %1203 = vmatpush2.msra.mxu0 0.0
        %1204 = vmatprep.subr.mxu0 0.0
        %1205 = vmatpush2.msra.mxu0 0.0
        %1206 = vmatprep.subr.mxu0 0.0
        %1207 = vmatpush2.msra.mxu0 0.0
        %1208 = vmatprep.mubr.f32.mxu0 0.0
        %1209 = vmatmul.mubr.f32.gmra.mxu0 %v1133
        %v1210 = vpop.f32.mrf.mxu0
        %v1211 = vadd.f32 0.0, %v1210
        %v1212 = vpop.f32.mrf.mxu0
        %v1213 = vadd.f32 0.0, %v1212
        %1214 = vdwg.mxu0
        %1215 = vmatprep.subr.mxu0 0.0
        %1216 = vmatpush1.msra.mxu0 0.0
        %1217 = vmatprep.subr.mxu0 0.0
        %1218 = vmatpush1.msra.mxu0 0.0
        %1219 = vmatprep.subr.mxu0 0.0
        %1220 = vmatpush1.msra.mxu0 0.0
        %1221 = vmatprep.subr.mxu0 0.0
        %1222 = vmatpush1.msra.mxu0 0.0
        %1223 = vmatprep.subr.mxu0 0.0
        %1224 = vmatpush1.msra.mxu0 0.0
        %1225 = vmatprep.subr.mxu0 0.0
        %1226 = vmatpush1.msra.mxu0 0.0
        %1227 = vmatprep.subr.mxu0 0.0
        %1228 = vmatpush1.msra.mxu0 0.0
        %1229 = vmatprep.subr.mxu0 0.0
        %1230 = vmatpush1.msra.mxu0 0.0
        %1231 = vmatprep.subr.mxu0 0.0
        %1232 = vmatpush1.msra.mxu0 0.0
        %1233 = vmatprep.subr.mxu0 0.0
        %1234 = vmatpush1.msra.mxu0 0.0
        %1235 = vmatprep.subr.mxu0 0.0
        %1236 = vmatpush1.msra.mxu0 0.0
        %1237 = vmatprep.subr.mxu0 0.0
        %1238 = vmatpush1.msra.mxu0 0.0
        %1239 = vmatprep.subr.mxu0 0.0
        %1240 = vmatpush1.msra.mxu0 0.0
        %1241 = vmatprep.subr.mxu0 0.0
        %1242 = vmatpush1.msra.mxu0 0.0
        %1243 = vmatprep.subr.mxu0 0.0
        %1244 = vmatpush1.msra.mxu0 0.0
        %1245 = vmatprep.subr.mxu0 %v1142
        %1246 = vmatpush1.msra.mxu0 %v1140
        %1247 = vmatprep.subr.mxu0 0.0
        %1248 = vmatpush2.msra.mxu0 0.0
        %1249 = vmatprep.subr.mxu0 0.0
        %1250 = vmatpush2.msra.mxu0 0.0
        %1251 = vmatprep.subr.mxu0 0.0
        %1252 = vmatpush2.msra.mxu0 0.0
        %1253 = vmatprep.subr.mxu0 0.0
        %1254 = vmatpush2.msra.mxu0 0.0
        %1255 = vmatprep.subr.mxu0 0.0
        %1256 = vmatpush2.msra.mxu0 0.0
        %1257 = vmatprep.subr.mxu0 0.0
        %1258 = vmatpush2.msra.mxu0 0.0
        %1259 = vmatprep.subr.mxu0 0.0
        %1260 = vmatpush2.msra.mxu0 0.0
        %1261 = vmatprep.subr.mxu0 0.0
        %1262 = vmatpush2.msra.mxu0 0.0
        %1263 = vmatprep.subr.mxu0 0.0
        %1264 = vmatpush2.msra.mxu0 0.0
        %1265 = vmatprep.subr.mxu0 0.0
        %1266 = vmatpush2.msra.mxu0 0.0
        %1267 = vmatprep.subr.mxu0 0.0
        %1268 = vmatpush2.msra.mxu0 0.0
        %1269 = vmatprep.subr.mxu0 0.0
        %1270 = vmatpush2.msra.mxu0 0.0
        %1271 = vmatprep.subr.mxu0 0.0
        %1272 = vmatpush2.msra.mxu0 0.0
        %1273 = vmatprep.subr.mxu0 0.0
        %1274 = vmatpush2.msra.mxu0 0.0
        %1275 = vmatprep.subr.mxu0 0.0
        %1276 = vmatpush2.msra.mxu0 0.0
        %1277 = vmatprep.subr.mxu0 0.0
        %1278 = vmatpush2.msra.mxu0 0.0
        %1279 = vmatprep.mubr.f32.mxu0 0.0
        %1280 = vmatmul.mubr.f32.gmra.mxu0 %v1133
        %v1281 = vpop.f32.mrf.mxu0
        %v1282 = vadd.f32 0.0, %v1281
        %v1283 = vpop.f32.mrf.mxu0
        %v1284 = vadd.f32 0.0, %v1283
        %1285 = vdwg.mxu0
        %v1286 = vadd.f32 %v1049, %v1211
        %v1287 = vadd.f32 %v1051, %v1213
        %v1288 = vadd.f32 %v1120, %v1282
        %v1289 = vadd.f32 %v1122, %v1284
        %vm1290 = vcmp.gt.f32.partialorder %v1286, 0.0
        %vm1291 = vcmp.gt.f32.partialorder %v1287, 0.0
        %vm1292 = vcmp.gt.f32.partialorder %v1288, 0.0
        %vm1293 = vcmp.gt.f32.partialorder %v1289, 0.0
        %v1294 = vmul.f32 %v1286, 0.2
        %v1295 = vmul.f32 %v1287, 0.2
        %v1296 = vmul.f32 %v1288, 0.2
        %v1297 = vmul.f32 %v1289, 0.2
        %v1298 = vsel %vm1290, %v1286, %v1294
        %v1299 = vsel %vm1291, %v1287, %v1295
        %v1300 = vsel %vm1292, %v1288, %v1296
        %v1301 = vsel %vm1293, %v1289, %v1297
        %1302 = vst [vmem:[%s358] sm:$0xff] %v1298
        %1303 = vst [vmem:[%s358 + $0x8] sm:$0xff] %v1299
        %1304 = vst [vmem:[%s358 + $0x10] sm:$0xff] %v1300
        %1305 = vst [vmem:[%s358 + $0x18] sm:$0xff] %v1301
        %v1306 = vld [vmem:[%s5] sm:$0xff]
        %1308 = vset.pattern.permute.xlu0 0
        %1309 = vperm.xlu0 %1308, %v1306
        %v1310 = vpop.permute.xlu0 %1309
        %v1312 = vmul.f32 %v1298, %v1310
        %v1313 = vmul.f32 %v1299, %v1310
        %v1314 = vmul.f32 %v1300, %v1310
        %v1315 = vmul.f32 %v1301, %v1310
        %v1316 = vrot.slane %v1312, 4
        %v1317 = vadd.f32 %v1312, %v1316
        %v1318 = vrot.slane %v1317, 2
        %v1319 = vadd.f32 %v1317, %v1318
        %v1320 = vrot.slane %v1319, 1
        %v1321 = vadd.f32 %v1319, %v1320
        %v1322 = vrot.slane %v1313, 4
        %v1323 = vadd.f32 %v1313, %v1322
        %v1324 = vrot.slane %v1323, 2
        %v1325 = vadd.f32 %v1323, %v1324
        %v1326 = vrot.slane %v1325, 1
        %v1327 = vadd.f32 %v1325, %v1326
        %v1328 = vrot.slane %v1314, 4
        %v1329 = vadd.f32 %v1314, %v1328
        %v1330 = vrot.slane %v1329, 2
        %v1331 = vadd.f32 %v1329, %v1330
        %v1332 = vrot.slane %v1331, 1
        %v1333 = vadd.f32 %v1331, %v1332
        %v1334 = vrot.slane %v1315, 4
        %v1335 = vadd.f32 %v1315, %v1334
        %v1336 = vrot.slane %v1335, 2
        %v1337 = vadd.f32 %v1335, %v1336
        %v1338 = vrot.slane %v1337, 1
        %v1339 = vadd.f32 %v1337, %v1338
        %vm1340 = vcmp.gt.f32.partialorder %v1321, 0.0
        %vm1341 = vcmp.gt.f32.partialorder %v1327, 0.0
        %vm1342 = vcmp.gt.f32.partialorder %v1333, 0.0
        %vm1343 = vcmp.gt.f32.partialorder %v1339, 0.0
        %v1344 = vmul.f32 %v1321, 0.2
        %v1345 = vmul.f32 %v1327, 0.2
        %v1346 = vmul.f32 %v1333, 0.2
        %v1347 = vmul.f32 %v1339, 0.2
        %v1348 = vsel %vm1340, %v1321, %v1344
        %v1349 = vsel %vm1341, %v1327, %v1345
        %v1350 = vsel %vm1342, %v1333, %v1346
        %v1351 = vsel %vm1343, %v1339, %v1347
        %v1352 = vsub.f32 0.0, %v1348
        %v1353 = vsub.f32 0.0, %v1349
        %v1354 = vsub.f32 0.0, %v1350
        %v1355 = vsub.f32 0.0, %v1351
        %vm1356 = vcmp.lt.s32.totalorder %v372, 24
        %v1357 = vmul.f32 %v1352, 1.442695
        %v1358 = vpow.pop %v1357
        %v1359 = vmul.f32 %v1353, 1.442695
        %v1360 = vpow.pop %v1359
        %v1361 = vmul.f32 %v1354, 1.442695
        %v1362 = vpow.pop %v1361
        %v1363 = vmul.f32 %v1355, 1.442695
        %v1364 = vpow.pop %v1363
        %v1369 = vcombine.low %v1358, %v1360
        %v1370 = vcombine.low %v1362, %v1364
        %v1372 = vunpack.c.l.s4 1983009808
        %v1373 = vunpack.c.0.s8 %v1372
        %v1374 = vlaneseq
        %v1375 = vshrl.u32 %v1374, 7
        %v1376 = vsub.s32 %v1373, %v1375
        %v1377 = vrot.slane %v1369, %v1376
        %v1379 = vunpack.c.l.s4 1983009808
        %v1380 = vunpack.c.0.s8 %v1379
        %v1381 = vlaneseq
        %v1382 = vshrl.u32 %v1381, 7
        %v1383 = vsub.s32 %v1380, %v1382
        %v1384 = vrot.slane %v1370, %v1383
        %v1385 = vcombine.low %v1377, %v1384
        %v1386 = vrot.slane %v1385, 7
        %v1388 = vsel %vm1356, %v1386, 0.0
        %v1391 = vunpack.c.l.s4 1966171168
        %v1392 = vunpack.c.0.s8 %v1391
        %v1393 = vlaneseq
        %v1394 = vshrl.u32 %v1393, 7
        %v1395 = vsub.s32 %v1392, %v1394
        %v1396 = vrot.slane %v1388, %v1395
        %v1397 = vcombine.high %v1396, %v1396
        %v1399 = vlaneseq
        %vm1400 = vcmp.ge.s32.totalorder %v1399, 0
        %vm1401 = vcmp.lt.s32.totalorder %v1399, 512
        %vm1402 = vmand %vm1400, %vm1401
        %1403 = vst.msk [vmem:[%s365] sm:$0xf] %vm1402, %v1397
        %p1404 = scmp.eq.s32.totalorder %s32, 0
        // Predicated region
        $region53: #{tpu_custom_call.1} parent=43 // pred_check
          %p1405 = pneg %p1404
        $region54: #{tpu_custom_call.1} parent=43 // pred_check_branch
          %1407 = sbr.rel (%p1405) target = $region56
        $region55: #{tpu_custom_call.1} parent=43 // pred_region
          %1408 = vst [vmem:[#allocation10] sm:$0x1] 0.0
        $region56: #{tpu_custom_call.1} parent=43 // pred_fallthru
          _
        %v1409 = vld [vmem:[#allocation10] sm:$0x1]
        %v1410 = vlaneseq
        %v1411 = vshrl.u32 %v1410, 7
        %v1412 = vsub.s32 1, %v1411
        %v1413 = vrot.slane %v1388, %v1412
        %v1414 = vlaneseq
        %v1415 = vshrl.u32 %v1414, 7
        %v1416 = vsub.s32 3, %v1415
        %v1417 = vrot.slane %v1388, %v1416
        %v1418 = vlaneseq
        %v1419 = vshrl.u32 %v1418, 7
        %v1420 = vsub.s32 5, %v1419
        %v1421 = vrot.slane %v1388, %v1420
        %v1422 = vlaneseq
        %v1423 = vshrl.u32 %v1422, 7
        %v1424 = vsub.s32 7, %v1423
        %v1425 = vrot.slane %v1388, %v1424
        %1430 = vmatprep.subr.mxu0 %v835
        %1431 = vmatpush1.xpose.msra.mxu0 %v834
        %1432 = vmatprep.subr.mxu0 %v831
        %1433 = vmatpush1.xpose.msra.mxu0 %v830
        %1434 = vmatprep.subr.mxu0 %v827
        %1435 = vmatpush1.xpose.msra.mxu0 %v826
        %1436 = vmatprep.subr.mxu0 %v823
        %1437 = vmatpush1.xpose.msra.mxu0 %v822
        %1438 = vmatprep.subr.mxu0 %v819
        %1439 = vmatpush1.xpose.msra.mxu0 %v818
        %1440 = vmatprep.subr.mxu0 %v815
        %1441 = vmatpush1.xpose.msra.mxu0 %v814
        %1442 = vmatprep.subr.mxu0 %v811
        %1443 = vmatpush1.xpose.msra.mxu0 %v810
        %1444 = vmatprep.subr.mxu0 %v807
        %1445 = vmatpush1.xpose.msra.mxu0 %v806
        %1446 = vmatprep.subr.mxu0 %v803
        %1447 = vmatpush1.xpose.msra.mxu0 %v802
        %1448 = vmatprep.subr.mxu0 %v799
        %1449 = vmatpush1.xpose.msra.mxu0 %v798
        %1450 = vmatprep.subr.mxu0 %v795
        %1451 = vmatpush1.xpose.msra.mxu0 %v794
        %1452 = vmatprep.subr.mxu0 %v791
        %1453 = vmatpush1.xpose.msra.mxu0 %v790
        %1454 = vmatprep.subr.mxu0 %v787
        %1455 = vmatpush1.xpose.msra.mxu0 %v786
        %1456 = vmatprep.subr.mxu0 %v783
        %1457 = vmatpush1.xpose.msra.mxu0 %v782
        %1458 = vmatprep.subr.mxu0 %v779
        %1459 = vmatpush1.xpose.msra.mxu0 %v778
        %1460 = vmatprep.subr.mxu0 %v775
        %1461 = vmatpush1.xpose.msra.mxu0 %v774
        %1462 = vmatprep.subr.mxu0 0.0
        %1463 = vmatpush2.xpose.msra.mxu0 0.0
        %1464 = vmatprep.subr.mxu0 0.0
        %1465 = vmatpush2.xpose.msra.mxu0 0.0
        %1466 = vmatprep.subr.mxu0 0.0
        %1467 = vmatpush2.xpose.msra.mxu0 0.0
        %1468 = vmatprep.subr.mxu0 0.0
        %1469 = vmatpush2.xpose.msra.mxu0 0.0
        %1470 = vmatprep.subr.mxu0 0.0
        %1471 = vmatpush2.xpose.msra.mxu0 0.0
        %1472 = vmatprep.subr.mxu0 0.0
        %1473 = vmatpush2.xpose.msra.mxu0 0.0
        %1474 = vmatprep.subr.mxu0 0.0
        %1475 = vmatpush2.xpose.msra.mxu0 0.0
        %1476 = vmatprep.subr.mxu0 0.0
        %1477 = vmatpush2.xpose.msra.mxu0 0.0
        %1478 = vmatprep.subr.mxu0 0.0
        %1479 = vmatpush2.xpose.msra.mxu0 0.0
        %1480 = vmatprep.subr.mxu0 0.0
        %1481 = vmatpush2.xpose.msra.mxu0 0.0
        %1482 = vmatprep.subr.mxu0 0.0
        %1483 = vmatpush2.xpose.msra.mxu0 0.0
        %1484 = vmatprep.subr.mxu0 0.0
        %1485 = vmatpush2.xpose.msra.mxu0 0.0
        %1486 = vmatprep.subr.mxu0 0.0
        %1487 = vmatpush2.xpose.msra.mxu0 0.0
        %1488 = vmatprep.subr.mxu0 0.0
        %1489 = vmatpush2.xpose.msra.mxu0 0.0
        %1490 = vmatprep.subr.mxu0 0.0
        %1491 = vmatpush2.xpose.msra.mxu0 0.0
        %1492 = vmatprep.subr.mxu0 0.0
        %1493 = vmatpush2.xpose.msra.mxu0 0.0
        %1494 = vmatprep.mubr.f32.mxu0 %v1417
        %1495 = vmatmul.mubr.f32.gmra.mxu0 %v1413
        %v1496 = vpop.f32.mrf.mxu0
        %v1497 = vadd.f32 0.0, %v1496
        %v1498 = vpop.f32.mrf.mxu0
        %1499 = vdwg.mxu0
        %1500 = vmatprep.subr.mxu0 %v837
        %1501 = vmatpush1.xpose.msra.mxu0 %v836
        %1502 = vmatprep.subr.mxu0 %v833
        %1503 = vmatpush1.xpose.msra.mxu0 %v832
        %1504 = vmatprep.subr.mxu0 %v829
        %1505 = vmatpush1.xpose.msra.mxu0 %v828
        %1506 = vmatprep.subr.mxu0 %v825
        %1507 = vmatpush1.xpose.msra.mxu0 %v824
        %1508 = vmatprep.subr.mxu0 %v821
        %1509 = vmatpush1.xpose.msra.mxu0 %v820
        %1510 = vmatprep.subr.mxu0 %v817
        %1511 = vmatpush1.xpose.msra.mxu0 %v816
        %1512 = vmatprep.subr.mxu0 %v813
        %1513 = vmatpush1.xpose.msra.mxu0 %v812
        %1514 = vmatprep.subr.mxu0 %v809
        %1515 = vmatpush1.xpose.msra.mxu0 %v808
        %1516 = vmatprep.subr.mxu0 %v805
        %1517 = vmatpush1.xpose.msra.mxu0 %v804
        %1518 = vmatprep.subr.mxu0 %v801
        %1519 = vmatpush1.xpose.msra.mxu0 %v800
        %1520 = vmatprep.subr.mxu0 %v797
        %1521 = vmatpush1.xpose.msra.mxu0 %v796
        %1522 = vmatprep.subr.mxu0 %v793
        %1523 = vmatpush1.xpose.msra.mxu0 %v792
        %1524 = vmatprep.subr.mxu0 %v789
        %1525 = vmatpush1.xpose.msra.mxu0 %v788
        %1526 = vmatprep.subr.mxu0 %v785
        %1527 = vmatpush1.xpose.msra.mxu0 %v784
        %1528 = vmatprep.subr.mxu0 %v781
        %1529 = vmatpush1.xpose.msra.mxu0 %v780
        %1530 = vmatprep.subr.mxu0 %v777
        %1531 = vmatpush1.xpose.msra.mxu0 %v776
        %1532 = vmatprep.subr.mxu0 0.0
        %1533 = vmatpush2.xpose.msra.mxu0 0.0
        %1534 = vmatprep.subr.mxu0 0.0
        %1535 = vmatpush2.xpose.msra.mxu0 0.0
        %1536 = vmatprep.subr.mxu0 0.0
        %1537 = vmatpush2.xpose.msra.mxu0 0.0
        %1538 = vmatprep.subr.mxu0 0.0
        %1539 = vmatpush2.xpose.msra.mxu0 0.0
        %1540 = vmatprep.subr.mxu0 0.0
        %1541 = vmatpush2.xpose.msra.mxu0 0.0
        %1542 = vmatprep.subr.mxu0 0.0
        %1543 = vmatpush2.xpose.msra.mxu0 0.0
        %1544 = vmatprep.subr.mxu0 0.0
        %1545 = vmatpush2.xpose.msra.mxu0 0.0
        %1546 = vmatprep.subr.mxu0 0.0
        %1547 = vmatpush2.xpose.msra.mxu0 0.0
        %1548 = vmatprep.subr.mxu0 0.0
        %1549 = vmatpush2.xpose.msra.mxu0 0.0
        %1550 = vmatprep.subr.mxu0 0.0
        %1551 = vmatpush2.xpose.msra.mxu0 0.0
        %1552 = vmatprep.subr.mxu0 0.0
        %1553 = vmatpush2.xpose.msra.mxu0 0.0
        %1554 = vmatprep.subr.mxu0 0.0
        %1555 = vmatpush2.xpose.msra.mxu0 0.0
        %1556 = vmatprep.subr.mxu0 0.0
        %1557 = vmatpush2.xpose.msra.mxu0 0.0
        %1558 = vmatprep.subr.mxu0 0.0
        %1559 = vmatpush2.xpose.msra.mxu0 0.0
        %1560 = vmatprep.subr.mxu0 0.0
        %1561 = vmatpush2.xpose.msra.mxu0 0.0
        %1562 = vmatprep.subr.mxu0 0.0
        %1563 = vmatpush2.xpose.msra.mxu0 0.0
        %1564 = vmatprep.mubr.f32.mxu0 %v1425
        %1565 = vmatmul.mubr.f32.gmra.mxu0 %v1421
        %v1566 = vpop.f32.mrf.mxu0
        %v1567 = vadd.f32 %v1497, %v1566
        %v1568 = vpop.f32.mrf.mxu0
        %1569 = vdwg.mxu0
        %v1570 = vadd.f32 %v1409, %v1567
        %1571 = vst [vmem:[#allocation10] sm:$0x1] %v1570
        %p1572 = scmp.eq.s32.totalorder %s32, 2
        // Predicated region
        $region57: #{tpu_custom_call.1} parent=43 // pred_check
          %p1573 = pneg %p1572
        $region58: #{tpu_custom_call.1} parent=43 // pred_check_branch
          %1575 = sbr.rel (%p1573) target = $region60
        $region59: #{tpu_custom_call.1} parent=43 // pred_region
          %v1576 = vld [vmem:[#allocation10] sm:$0x1]
          %vm1577 = vcmp.eq.f32.partialorder %v1576, 0.0
          %v1578 = vsel %vm1577, 1e-12, %v1576
          %1579 = vst [vmem:[#allocation10] sm:$0x1] %v1578
        $region60: #{tpu_custom_call.1} parent=43 // pred_fallthru
          _
        %s1580 = sand.u32 %s176, 1
        %s1581 = scalar_lea.sflag [#allocation4], %s1580
        %s1582 = sand.u32 %s176, 1
        %s1583 = smul.addr %s1582, 32
        %s1584 = scalar_lea.vmem [#allocation7], %s1583
        %s1585 = sand.u32 %s32, 1
        %s1586 = scalar_lea.sflag [#allocation9], %s1585
        %s1587 = sand.u32 %s202, 1
        %s1588 = smul.addr %s1587, 4
        %s1589 = scalar_lea.vmem [#allocation8], %s1588
        // Predicated region
        $region61: #{tpu_custom_call.1} parent=43 // pred_check
          %p1590 = pneg %p186
        $region62: #{tpu_custom_call.1} parent=43 // pred_check_branch
          %1592 = sbr.rel (%p1590) target = $region64
        $region63: #{tpu_custom_call.1} parent=43 // pred_region
          %s1593 = smul.u32 4, %s32
          %s1595 = ssub.s32 512, 512
          %1596 = vsyncadd %s1581, %s1595
          %s1597 = smul.addr %s1593, 128
          %s1598 = scalar_lea.hbm %s6, %s1597
          %s1600 = sshll.u32 %s1584, 4
          %s1601 = int_to_ptr.vmem [resolvable:$true] %s1600
          %1603 = dma.vmem_to_hbm [thread:$0]  %s1601, 512, %s1598, %s1581
        $region64: #{tpu_custom_call.1} parent=43 // pred_fallthru
          _
        // Predicated region
        $region65: #{tpu_custom_call.1} parent=43 // pred_check
          %p1604 = pneg %p212
        $region66: #{tpu_custom_call.1} parent=43 // pred_check_branch
          %1606 = sbr.rel (%p1604) target = $region68
        $region67: #{tpu_custom_call.1} parent=43 // pred_region
          %s1607 = smul.u32 4, %s32
          %s1609 = ssub.s32 64, 64
          %1610 = vsyncadd %s1586, %s1609
          %s1611 = smul.addr %s1607, 16
          %s1612 = scalar_lea.hbm %s7, %s1611
          %s1614 = sshll.u32 %s1589, 4
          %s1615 = int_to_ptr.vmem [resolvable:$true] %s1614
          %1617 = dma.vmem_to_hbm [thread:$0]  %s1615, 64, %s1612, %s1586
        $region68: #{tpu_custom_call.1} parent=43 // pred_fallthru
          _
        // Predicated region
        $region69: #{tpu_custom_call.1} parent=43 // pred_check
          %p1618 = pneg %p233
        $region70: #{tpu_custom_call.1} parent=43 // pred_check_branch
          %1620 = sbr.rel (%p1618) target = $region72
        $region71: #{tpu_custom_call.1} parent=43 // pred_region
          %s1622 = ssub.s32 16, 16
          %1623 = vsyncadd [#allocation9], %s1622
          %s1625 = sshll.u32 [#allocation10], 4
          %s1626 = int_to_ptr.vmem [resolvable:$true] %s1625
          %1628 = dma.vmem_to_hbm [thread:$0]  %s1626, 16, %s8, [#allocation9]
        $region72: #{tpu_custom_call.1} parent=43 // pred_fallthru
          _
        // Predicated region
        $region73: #{tpu_custom_call.1} parent=43 // pred_check
          %p1629 = pneg %p233
        $region74: #{tpu_custom_call.1} parent=43 // pred_check_branch
          %1631 = sbr.rel (%p1629) target = $region76
        $region75: #{tpu_custom_call.1} parent=43 // pred_region
          %1632 = dma.done [#allocation9], 16
        $region76: #{tpu_custom_call.1} parent=43 // pred_fallthru
          _
      $region44: #{tpu_custom_call.1} parent=5 // pred_fallthru
        _
      %p1633 = scmp.le.s32.totalorder 2, %s27
      // Predicated region
      $region77: #{tpu_custom_call.1} parent=5 // pred_check
        %p1634 = pneg %p1633
      $region78: #{tpu_custom_call.1} parent=5 // pred_check_branch
        %1636 = sbr.rel (%p1634) target = $region80
      $region79: #{tpu_custom_call.1} parent=5 // pred_region
        %s1637 = ssub.s32 %s27, 2
        // Predicated region
        $region81: #{tpu_custom_call.1} parent=79 // pred_check
          %p1638 = pneg %p192
        $region82: #{tpu_custom_call.1} parent=79 // pred_check_branch
          %1640 = sbr.rel (%p1638) target = $region84
        $region83: #{tpu_custom_call.1} parent=79 // pred_region
          %s1641 = sand.u32 %s177, 1
          %s1642 = scalar_lea.sflag [#allocation4], %s1641
          %s1643 = sand.u32 %s177, 1
          %s1644 = smul.addr %s1643, 32
          %s1645 = scalar_lea.vmem [#allocation7], %s1644
          %1646 = dma.done %s1642, 512
        $region84: #{tpu_custom_call.1} parent=79 // pred_fallthru
          _
        // Predicated region
        $region85: #{tpu_custom_call.1} parent=79 // pred_check
          %p1647 = pneg %p218
        $region86: #{tpu_custom_call.1} parent=79 // pred_check_branch
          %1649 = sbr.rel (%p1647) target = $region88
        $region87: #{tpu_custom_call.1} parent=79 // pred_region
          %s1650 = sand.u32 %s33, 1
          %s1651 = scalar_lea.sflag [#allocation9], %s1650
          %s1652 = sand.u32 %s203, 1
          %s1653 = smul.addr %s1652, 4
          %s1654 = scalar_lea.vmem [#allocation8], %s1653
          %1655 = dma.done %s1651, 64
        $region88: #{tpu_custom_call.1} parent=79 // pred_fallthru
          _
      $region80: #{tpu_custom_call.1} parent=5 // pred_fallthru
        _
    $region6: #{tpu_custom_call.1} parent=1 // loop_footer
      %s31 = sadd.s32 1, %s27
    $region7: #{tpu_custom_call.1} parent=1 // loop_footer_branch
      %26 = sbr.rel target = $region3
    $region8: #{tpu_custom_call.1} parent=1 // loop_exit
      _
    %1656 = vsyncpa [#allocation3], 1
    %s1657 = scalar_lea.sflag [#allocation3], 1
    %1658 = vsyncpa %s1657, 1
    %1659 = vsyncpa [#allocation6], 1
    %s1660 = scalar_lea.sflag [#allocation6], 1
    %1661 = vsyncpa %s1660, 1
    %1662 = vsyncpa [#allocation4], 1
    %s1663 = scalar_lea.sflag [#allocation4], 1
    %1664 = vsyncpa %s1663, 1
    %1665 = vsyncpa [#allocation9], 1
    %s1666 = scalar_lea.sflag [#allocation9], 1
    %1667 = vsyncpa %s1666, 1

</llo_original>
